<compile_context>
chip_gen: v7x
topology: tpu7x:2x2x1
jax: 0.10.0
libtpu: 0.0.40
codegen_flags: <defaults>
</compile_context>

<pallas_src>
import functools

import jax
import jax.numpy as jnp
from jax.experimental import pallas as pl
from jax.experimental.pallas import tpu as pltpu


# ---------------------------------------------------------------------------
# Kernels
# ---------------------------------------------------------------------------

def _kernel_wide(x_ref, w1, b1, w2, b2, w3, b3, o_ref, *, d_out):
    """Both branches carried together: layer-1 concat + block-diag layers 2/3.
    Every layer is a single 256-lane matmul (fills the 256x256 MXU on v6e/v7x).
    bf16 MXU inputs, f32 accumulation, f32 bias/ReLU/product."""
    x = x_ref[...].astype(jnp.bfloat16)                         # (bb, D_in)
    h = jnp.dot(x, w1[...], preferred_element_type=jnp.float32)
    h = jnp.maximum(h + b1[...], 0.0).astype(jnp.bfloat16)      # (bb, 2H)
    h = jnp.dot(h, w2[...], preferred_element_type=jnp.float32)
    h = jnp.maximum(h + b2[...], 0.0).astype(jnp.bfloat16)      # (bb, 2H)
    y = jnp.dot(h, w3[...], preferred_element_type=jnp.float32) + b3[...]
    ff = y[:, :d_out]                                           # fead_forward_net(x)
    sc = y[:, d_out:]                                           # scale_net(x)
    o_ref[...] = (sc * ff).astype(o_ref.dtype)


def _kernel_narrow(x_ref, w1, b1,
                   fw2, fb2, fw3, fb3,
                   sw2, sb2, sw3, sb3,
                   o_ref, *, h_dim):
    """Layer-1 concat only; layers 2/3 stay per-branch 128-wide (v5e MXU)."""
    x = x_ref[...].astype(jnp.bfloat16)                         # (bb, D_in)
    h = jnp.dot(x, w1[...], preferred_element_type=jnp.float32)
    h = jnp.maximum(h + b1[...], 0.0).astype(jnp.bfloat16)      # (bb, 2H)

    def tail(hh, w2, b2, w3, b3):
        hh = jnp.dot(hh, w2[...], preferred_element_type=jnp.float32)
        hh = jnp.maximum(hh + b2[...], 0.0).astype(jnp.bfloat16)
        return jnp.dot(hh, w3[...], preferred_element_type=jnp.float32) + b3[...]

    ff = tail(h[:, :h_dim], fw2, fb2, fw3, fb3)                 # fead_forward_net(x)
    sc = tail(h[:, h_dim:], sw2, sb2, sw3, sb3)                 # scale_net(x)
    o_ref[...] = (sc * ff).astype(o_ref.dtype)


# ---------------------------------------------------------------------------
# One-time parameter packing (init-side, NOT per forward call)
# ---------------------------------------------------------------------------

def _device_kind():
    try:
        return jax.devices()[0].device_kind.lower()
    except Exception:
        return ""


def prepare_params(ff_params, sc_params, *, wide_mxu=None):
    """Pack PyTorch-layout (out,in) params of both sub-nets into MXU-friendly
    bf16 (in,out) weights.  Call ONCE at init; pass the result to
    mymodel_forward."""
    fw1, fb1, fw2, fb2, fw3, fb3 = ff_params
    sw1, sb1, sw2, sb2, sw3, sb3 = sc_params
    H, D_in = fw1.shape
    D_out = fw3.shape[0]
    assert sw1.shape == (H, D_in) and sw3.shape[0] == D_out, \
        "both sub-nets must share the same architecture"

    if wide_mxu is None:
        # 256x256 MXU on v6e/v7x -> block-diag widening pays off; v5e and
        # older (128x128 MXU) would only waste FLOPs.
        kind = _device_kind()
        wide_mxu = not any(t in kind for t in ("v2", "v3", "v4", "v5"))

    bf = lambda w: w.T.astype(jnp.bfloat16)                     # (in, out) bf16
    rowf = lambda b: b.reshape(1, -1).astype(jnp.float32)       # (1, out) f32

    # Layer 1 of both branches is always fused: same input x, zero extra FLOPs.
    w1c = jnp.concatenate([bf(fw1), bf(sw1)], axis=1)           # (D_in, 2H)
    b1c = jnp.concatenate([rowf(fb1), rowf(sb1)], axis=1)       # (1, 2H)

    if wide_mxu:
        z_hh = jnp.zeros((H, H), jnp.bfloat16)
        z_ho = jnp.zeros((H, D_out), jnp.bfloat16)
        w2b = jnp.block([[bf(fw2), z_hh], [z_hh, bf(sw2)]])     # (2H, 2H)
        b2c = jnp.concatenate([rowf(fb2), rowf(sb2)], axis=1)   # (1, 2H)
        w3b = jnp.block([[bf(fw3), z_ho], [z_ho, bf(sw3)]])     # (2H, 2*D_out)
        b3c = jnp.concatenate([rowf(fb3), rowf(sb3)], axis=1)   # (1, 2*D_out)
        weights = (w1c, b1c, w2b, b2c, w3b, b3c)
    else:
        weights = (w1c, b1c,
                   bf(fw2), rowf(fb2), bf(fw3), rowf(fb3),
                   bf(sw2), rowf(sb2), bf(sw3), rowf(sb3))

    meta = dict(mode="wide" if wide_mxu else "narrow",
                D_in=int(D_in), H=int(H), D_out=int(D_out))
    return meta, weights


# ---------------------------------------------------------------------------
# Forward
# ---------------------------------------------------------------------------

def _pick_block_b(B, D_in, D_out):
    """Whole batch in one grid step on single-TC chips; two 'parallel' steps on
    v7x (2 TensorCores); divisor search keeps VMEM bounded for large batches."""
    row_bytes = 2 * 4 * (D_in + D_out)              # f32 x + f32 out, double-buffered
    max_rows = max(8, (16 * 1024 * 1024) // row_bytes)
    if B <= max_rows:
        if "v7" in _device_kind() and B % 16 == 0:
            return B // 2
        return B
    best = None
    d = 8
    while d <= max_rows:
        if B % d == 0:
            best = d
        d += 8
    if best is not None:
        return best
    # TODO(synk): pad the batch dimension for awkward (e.g. prime) huge batches.
    return B


@functools.partial(jax.jit, static_argnames=("mode", "h_dim", "d_out", "block_b"))
def _forward_jit(x, weights, *, mode, h_dim, d_out, block_b):
    B, D_in = x.shape

    if mode == "wide":
        kernel = functools.partial(_kernel_wide, d_out=d_out)
    else:
        kernel = functools.partial(_kernel_narrow, h_dim=h_dim)

    x_spec = pl.BlockSpec((block_b, D_in), lambda i: (i, 0))
    w_specs = [pl.BlockSpec(w.shape, lambda i: (0, 0)) for w in weights]

    # Rough resident-VMEM estimate; only raise the scoped limit when a larger
    # config needs it (cap well below v7x's 64 MiB physical VMEM).
    w_bytes = sum(int(w.size) * w.dtype.itemsize for w in weights)
    io_bytes = 2 * block_b * 4 * (D_in + d_out)
    est_vmem = 2 * w_bytes + io_bytes + (1 << 20)
    vmem_limit = None
    if est_vmem > 30 * 1024 * 1024:
        # TODO(synk): for config-scaled H approaching the v7x 64 MiB VMEM,
        # switch to K-tiling the HxH layers (reduction grid axis + accumulator
        # scratch) and single-buffer the constant weight blocks.
        vmem_limit = min(est_vmem, 48 * 1024 * 1024)

    return pl.pallas_call(
        kernel,
        out_shape=jax.ShapeDtypeStruct((B, d_out), x.dtype),
        grid_spec=pltpu.PrefetchScalarGridSpec(
            num_scalar_prefetch=0,
            grid=(B // block_b,),
            in_specs=[x_spec] + w_specs,
            out_specs=pl.BlockSpec((block_b, d_out), lambda i: (i, 0)),
        ),
        compiler_params=pltpu.CompilerParams(
            dimension_semantics=("parallel",),
            vmem_limit_bytes=vmem_limit,
        ),
    )(x, *weights)


def mymodel_forward(x, packed, *, block_b=None):
    meta, weights = packed
    B, D_in = x.shape
    assert D_in == meta["D_in"], "input feature width mismatch"
    if block_b is None:
        block_b = _pick_block_b(B, D_in, meta["D_out"])
    assert B % block_b == 0, "batch must be divisible by the batch tile"
    return _forward_jit(x, tuple(weights), mode=meta["mode"], h_dim=meta["H"],
                        d_out=meta["D_out"], block_b=block_b)


# ---------------------------------------------------------------------------
# Demo / self-check
# ---------------------------------------------------------------------------

if __name__ == "__main__":
    # Canonical config-built arch for BOTH sub-nets:
    #   [Linear(64,128), ReLU(), Linear(128,128), ReLU(), Linear(128,32)]
    B, D_in, H, D_out = 256, 64, 128, 32

    key = jax.random.PRNGKey(0)
    keys = jax.random.split(key, 13)

    def init_linear(kw, kb, fan_in, fan_out):
        bound = 1.0 / jnp.sqrt(fan_in)
        w = jax.random.uniform(kw, (fan_out, fan_in), jnp.float32, -bound, bound)
        b = jax.random.uniform(kb, (fan_out,), jnp.float32, -bound, bound)
        return w, b

    x = jax.random.normal(keys[0], (B, D_in), dtype=jnp.float32)

    fw1, fb1 = init_linear(keys[1], keys[2], D_in, H)
    fw2, fb2 = init_linear(keys[3], keys[4], H, H)
    fw3, fb3 = init_linear(keys[5], keys[6], H, D_out)
    sw1, sb1 = init_linear(keys[7], keys[8], D_in, H)
    sw2, sb2 = init_linear(keys[9], keys[10], H, H)
    sw3, sb3 = init_linear(keys[11], keys[12], H, D_out)

    ff_params = (fw1, fb1, fw2, fb2, fw3, fb3)
    sc_params = (sw1, sb1, sw2, sb2, sw3, sb3)

    packed = prepare_params(ff_params, sc_params)     # ONE-TIME init-side packing
    out = jax.block_until_ready(mymodel_forward(x, packed))

    # Reference 1: mirrors the kernel's bf16-input / f32-accumulate matmuls.
    def ref_mlp_bf16(x, w1, b1, w2, b2, w3, b3):
        xb = x.astype(jnp.bfloat16)
        h = jnp.dot(xb, w1.T.astype(jnp.bfloat16), preferred_element_type=jnp.float32) + b1
        h = jnp.maximum(h, 0.0).astype(jnp.bfloat16)
        h = jnp.dot(h, w2.T.astype(jnp.bfloat16), preferred_element_type=jnp.float32) + b2
        h = jnp.maximum(h, 0.0).astype(jnp.bfloat16)
        return jnp.dot(h, w3.T.astype(jnp.bfloat16), preferred_element_type=jnp.float32) + b3

    # Reference 2: pure f32 semantics of the original PyTorch module.
    def ref_mlp_f32(x, w1, b1, w2, b2, w3, b3):
        h = jnp.maximum(x @ w1.T + b1, 0.0)
        h = jnp.maximum(h @ w2.T + b2, 0.0)
        return h @ w3.T + b3

    ref_bf16 = ref_mlp_bf16(x, *sc_params) * ref_mlp_bf16(x, *ff_params)
    ref_f32 = ref_mlp_f32(x, *sc_params) * ref_mlp_f32(x, *ff_params)

    assert out.shape == (B, D_out)
    assert jnp.allclose(out, ref_bf16, atol=2e-3, rtol=2e-3), "mismatch vs bf16 reference"
    # TODO(synk): make the bf16 inter-layer cast optional if strict f32 parity
    # is needed for much larger H or ill-conditioned weights.
    assert jnp.allclose(out, ref_f32, atol=5e-2, rtol=5e-2), "mismatch vs f32 reference"

    print("KERNEL_OK")
</pallas_src>

<mosaic_0001>
module attributes {stable_mosaic.version = 11 : i64} {
  func.func @_kernel_wide(%arg0: i32, %arg1: memref<256x64xf32, #tpu.memory_space<vmem>>, %arg2: memref<64x256xbf16, #tpu.memory_space<vmem>>, %arg3: memref<1x256xf32, #tpu.memory_space<vmem>>, %arg4: memref<256x256xbf16, #tpu.memory_space<vmem>>, %arg5: memref<1x256xf32, #tpu.memory_space<vmem>>, %arg6: memref<256x64xbf16, #tpu.memory_space<vmem>>, %arg7: memref<1x64xf32, #tpu.memory_space<vmem>>, %arg8: memref<256x32xf32, #tpu.memory_space<vmem>>) attributes {dimension_semantics = [#tpu.dimension_semantics<parallel>], iteration_bounds = array<i64: 1>, scalar_prefetch = 0 : i64, scratch_operands = 0 : i64, tpu.core_type = #tpu.core_type<tc>, window_params = [{transform_indices = @transform_0, window_bounds = array<i64: 256, 64>}, {pipeline_mode = #tpu.pipeline_mode<synchronous>, transform_indices = @transform_1, window_bounds = array<i64: 64, 256>}, {pipeline_mode = #tpu.pipeline_mode<synchronous>, transform_indices = @transform_2, window_bounds = array<i64: 1, 256>}, {pipeline_mode = #tpu.pipeline_mode<synchronous>, transform_indices = @transform_3, window_bounds = array<i64: 256, 256>}, {pipeline_mode = #tpu.pipeline_mode<synchronous>, transform_indices = @transform_4, window_bounds = array<i64: 1, 256>}, {pipeline_mode = #tpu.pipeline_mode<synchronous>, transform_indices = @transform_5, window_bounds = array<i64: 256, 64>}, {pipeline_mode = #tpu.pipeline_mode<synchronous>, transform_indices = @transform_6, window_bounds = array<i64: 1, 64>}, {transform_indices = @transform_7, window_bounds = array<i64: 256, 32>}]} {
    %c0 = arith.constant 0 : index
    %c0_0 = arith.constant 0 : index
    %0 = vector.load %arg1[%c0, %c0_0] : memref<256x64xf32, #tpu.memory_space<vmem>>, vector<256x64xf32>
    %1 = arith.truncf %0 : vector<256x64xf32> to vector<256x64xbf16>
    %c0_1 = arith.constant 0 : index
    %c0_2 = arith.constant 0 : index
    %2 = vector.load %arg2[%c0_1, %c0_2] : memref<64x256xbf16, #tpu.memory_space<vmem>>, vector<64x256xbf16>
    %cst = arith.constant dense<0.000000e+00> : vector<256x256xf32>
    %3 = tpu.matmul %1, %2, %cst {dimension_numbers = #tpu.dot_dimension_numbers<[1], [0], [0], [1], [0, 0, 1, 1], [], []>} : vector<256x64xbf16>, vector<64x256xbf16>, vector<256x256xf32> -> vector<256x256xf32>
    %c0_3 = arith.constant 0 : index
    %c0_4 = arith.constant 0 : index
    %4 = vector.load %arg3[%c0_3, %c0_4] : memref<1x256xf32, #tpu.memory_space<vmem>>, vector<1x256xf32>
    %5 = vector.broadcast %4 : vector<1x256xf32> to vector<256x256xf32>
    %6 = arith.addf %3, %5 : vector<256x256xf32>
    %cst_5 = arith.constant 0.000000e+00 : f32
    %7 = vector.broadcast %cst_5 : f32 to vector<256x256xf32>
    %8 = arith.maximumf %6, %7 : vector<256x256xf32>
    %9 = arith.truncf %8 : vector<256x256xf32> to vector<256x256xbf16>
    %c0_6 = arith.constant 0 : index
    %c0_7 = arith.constant 0 : index
    %10 = vector.load %arg4[%c0_6, %c0_7] : memref<256x256xbf16, #tpu.memory_space<vmem>>, vector<256x256xbf16>
    %cst_8 = arith.constant dense<0.000000e+00> : vector<256x256xf32>
    %11 = tpu.matmul %9, %10, %cst_8 {dimension_numbers = #tpu.dot_dimension_numbers<[1], [0], [0], [1], [0, 0, 1, 1], [], []>} : vector<256x256xbf16>, vector<256x256xbf16>, vector<256x256xf32> -> vector<256x256xf32>
    %c0_9 = arith.constant 0 : index
    %c0_10 = arith.constant 0 : index
    %12 = vector.load %arg5[%c0_9, %c0_10] : memref<1x256xf32, #tpu.memory_space<vmem>>, vector<1x256xf32>
    %13 = vector.broadcast %12 : vector<1x256xf32> to vector<256x256xf32>
    %14 = arith.addf %11, %13 : vector<256x256xf32>
    %cst_11 = arith.constant 0.000000e+00 : f32
    %15 = vector.broadcast %cst_11 : f32 to vector<256x256xf32>
    %16 = arith.maximumf %14, %15 : vector<256x256xf32>
    %17 = arith.truncf %16 : vector<256x256xf32> to vector<256x256xbf16>
    %c0_12 = arith.constant 0 : index
    %c0_13 = arith.constant 0 : index
    %18 = vector.load %arg6[%c0_12, %c0_13] : memref<256x64xbf16, #tpu.memory_space<vmem>>, vector<256x64xbf16>
    %cst_14 = arith.constant dense<0.000000e+00> : vector<256x64xf32>
    %19 = tpu.matmul %17, %18, %cst_14 {dimension_numbers = #tpu.dot_dimension_numbers<[1], [0], [0], [1], [0, 0, 1, 1], [], []>} : vector<256x256xbf16>, vector<256x64xbf16>, vector<256x64xf32> -> vector<256x64xf32>
    %c0_15 = arith.constant 0 : index
    %c0_16 = arith.constant 0 : index
    %20 = vector.load %arg7[%c0_15, %c0_16] : memref<1x64xf32, #tpu.memory_space<vmem>>, vector<1x64xf32>
    %21 = vector.broadcast %20 : vector<1x64xf32> to vector<256x64xf32>
    %22 = arith.addf %19, %21 : vector<256x64xf32>
    %23 = vector.extract_strided_slice %22 {offsets = [0, 0], sizes = [256, 32], strides = [1, 1]} : vector<256x64xf32> to vector<256x32xf32>
    %24 = vector.extract_strided_slice %22 {offsets = [0, 32], sizes = [256, 32], strides = [1, 1]} : vector<256x64xf32> to vector<256x32xf32>
    %25 = arith.mulf %24, %23 : vector<256x32xf32>
    %c0_17 = arith.constant 0 : index
    %c0_18 = arith.constant 0 : index
    %26 = vector.load %arg8[%c0_17, %c0_18] : memref<256x32xf32, #tpu.memory_space<vmem>>, vector<256x32xf32>
    tpu.vector_store %arg8[%c0_17, %c0_18], %25 {strides = array<i32>} : memref<256x32xf32, #tpu.memory_space<vmem>>, vector<256x32xf32>,
    return
  }
  func.func @transform_0(%arg0: i32) -> (i32, i32) {
    %c0_i32 = arith.constant 0 : i32
    %c0_i32_0 = arith.constant 0 : i32
    return %arg0, %c0_i32 : i32, i32
  }
  func.func @transform_1(%arg0: i32) -> (i32, i32) {
    %c0_i32 = arith.constant 0 : i32
    %c0_i32_0 = arith.constant 0 : i32
    %c0_i32_1 = arith.constant 0 : i32
    return %c0_i32, %c0_i32_0 : i32, i32
  }
  func.func @transform_2(%arg0: i32) -> (i32, i32) {
    %c0_i32 = arith.constant 0 : i32
    %c0_i32_0 = arith.constant 0 : i32
    %c0_i32_1 = arith.constant 0 : i32
    return %c0_i32, %c0_i32_0 : i32, i32
  }
  func.func @transform_3(%arg0: i32) -> (i32, i32) {
    %c0_i32 = arith.constant 0 : i32
    %c0_i32_0 = arith.constant 0 : i32
    %c0_i32_1 = arith.constant 0 : i32
    return %c0_i32, %c0_i32_0 : i32, i32
  }
  func.func @transform_4(%arg0: i32) -> (i32, i32) {
    %c0_i32 = arith.constant 0 : i32
    %c0_i32_0 = arith.constant 0 : i32
    %c0_i32_1 = arith.constant 0 : i32
    return %c0_i32, %c0_i32_0 : i32, i32
  }
  func.func @transform_5(%arg0: i32) -> (i32, i32) {
    %c0_i32 = arith.constant 0 : i32
    %c0_i32_0 = arith.constant 0 : i32
    %c0_i32_1 = arith.constant 0 : i32
    return %c0_i32, %c0_i32_0 : i32, i32
  }
  func.func @transform_6(%arg0: i32) -> (i32, i32) {
    %c0_i32 = arith.constant 0 : i32
    %c0_i32_0 = arith.constant 0 : i32
    %c0_i32_1 = arith.constant 0 : i32
    return %c0_i32, %c0_i32_0 : i32, i32
  }
  func.func @transform_7(%arg0: i32) -> (i32, i32) {
    %c0_i32 = arith.constant 0 : i32
    %c0_i32_0 = arith.constant 0 : i32
    return %arg0, %c0_i32 : i32, i32
  }
}

</mosaic_0001>

<llo_original>
// kernel: _forward_jit.1
$region0: #{_forward_jit.1}
  #allocation0 [shape = 'u32[]', space=smem, size = 0x4, offset = 0x4, fixed_abs, tag = 'smem constant byte address 0x4 - core index']
  #allocation1 [shape = 'u32[144,128]{1,0:T(1,128)}', space=vmem, size = 0x12000, scoped, tag = 'internal scratch']
  %s0 = inlined_call_operand.vmem [shape: f32[256,64], index: 0, kind: input, shape index: {}]
  %s1 = inlined_call_operand.vmem [shape: bf16[64,256], index: 1, kind: input, shape index: {}]
  %s2 = inlined_call_operand.vmem [shape: f32[1,256], index: 2, kind: input, shape index: {}]
  %s3 = inlined_call_operand.vmem [shape: bf16[256,256], index: 3, kind: input, shape index: {}]
  %s4 = inlined_call_operand.vmem [shape: f32[1,256], index: 4, kind: input, shape index: {}]
  %s5 = inlined_call_operand.vmem [shape: bf16[256,64], index: 5, kind: input, shape index: {}]
  %s6 = inlined_call_operand.vmem [shape: f32[1,64], index: 6, kind: input, shape index: {}]
  %s7 = inlined_call_operand.vmem [shape: f32[256,32], index: 7, kind: output, shape index: {}]
  %s8 = sld [smem:[#allocation0]]
  $region38: #{_forward_jit.1} parent=0
    _
  %s10 = ssub.s32 1, %s8
  %s11 = scalar_select 0, %s10, %s8
  // Predicated region
  $region2: #{_forward_jit.1} parent=0 // pred_check
    _
  $region3: #{_forward_jit.1} parent=0 // pred_check_branch
    %13 = sbr.rel (0) target = $region5
  $region4: #{_forward_jit.1} parent=0 // pred_region
    _
  $region5: #{_forward_jit.1} parent=0 // pred_fallthru
    _
  // Predicated region
  $region6: #{_forward_jit.1} parent=0 // pred_check
    _
  $region7: #{_forward_jit.1} parent=0 // pred_check_branch
    %15 = sbr.rel (0) target = $region9
  $region8: #{_forward_jit.1} parent=0 // pred_region
    _
  $region9: #{_forward_jit.1} parent=0 // pred_fallthru
    _
  // Predicated region
  $region10: #{_forward_jit.1} parent=0 // pred_check
    _
  $region11: #{_forward_jit.1} parent=0 // pred_check_branch
    %17 = sbr.rel (0) target = $region13
  $region12: #{_forward_jit.1} parent=0 // pred_region
    _
  $region13: #{_forward_jit.1} parent=0 // pred_fallthru
    _
  // Predicated region
  $region14: #{_forward_jit.1} parent=0 // pred_check
    _
  $region15: #{_forward_jit.1} parent=0 // pred_check_branch
    %19 = sbr.rel (0) target = $region17
  $region16: #{_forward_jit.1} parent=0 // pred_region
    _
  $region17: #{_forward_jit.1} parent=0 // pred_fallthru
    _
  // Predicated region
  $region18: #{_forward_jit.1} parent=0 // pred_check
    _
  $region19: #{_forward_jit.1} parent=0 // pred_check_branch
    %21 = sbr.rel (0) target = $region21
  $region20: #{_forward_jit.1} parent=0 // pred_region
    _
  $region21: #{_forward_jit.1} parent=0 // pred_fallthru
    _
  // Predicated region
  $region22: #{_forward_jit.1} parent=0 // pred_check
    _
  $region23: #{_forward_jit.1} parent=0 // pred_check_branch
    %23 = sbr.rel (0) target = $region25
  $region24: #{_forward_jit.1} parent=0 // pred_region
    _
  $region25: #{_forward_jit.1} parent=0 // pred_fallthru
    _
  // Predicated region
  $region26: #{_forward_jit.1} parent=0 // pred_check
    _
  $region27: #{_forward_jit.1} parent=0 // pred_check_branch
    %25 = sbr.rel (0) target = $region29
  $region28: #{_forward_jit.1} parent=0 // pred_region
    _
  $region29: #{_forward_jit.1} parent=0 // pred_fallthru
    _
  %v27 = vld [vmem:[%s0] sm:$0xff]
  %v28 = vld [vmem:[%s0 + $0x8] sm:$0xff]
  %v29 = vld [vmem:[%s0 + $0x10] sm:$0xff]
  %v30 = vld [vmem:[%s0 + $0x18] sm:$0xff]
  %v31 = vld [vmem:[%s0 + $0x20] sm:$0xff]
  %v32 = vld [vmem:[%s0 + $0x28] sm:$0xff]
  %v33 = vld [vmem:[%s0 + $0x30] sm:$0xff]
  %v34 = vld [vmem:[%s0 + $0x38] sm:$0xff]
  %v35 = vld [vmem:[%s0 + $0x40] sm:$0xff]
  %v36 = vld [vmem:[%s0 + $0x48] sm:$0xff]
  %v37 = vld [vmem:[%s0 + $0x50] sm:$0xff]
  %v38 = vld [vmem:[%s0 + $0x58] sm:$0xff]
  %v39 = vld [vmem:[%s0 + $0x60] sm:$0xff]
  %v40 = vld [vmem:[%s0 + $0x68] sm:$0xff]
  %v41 = vld [vmem:[%s0 + $0x70] sm:$0xff]
  %v42 = vld [vmem:[%s0 + $0x78] sm:$0xff]
  %v43 = vld [vmem:[%s0 + $0x80] sm:$0xff]
  %v44 = vld [vmem:[%s0 + $0x88] sm:$0xff]
  %v45 = vld [vmem:[%s0 + $0x90] sm:$0xff]
  %v46 = vld [vmem:[%s0 + $0x98] sm:$0xff]
  %v47 = vld [vmem:[%s0 + $0xa0] sm:$0xff]
  %v48 = vld [vmem:[%s0 + $0xa8] sm:$0xff]
  %v49 = vld [vmem:[%s0 + $0xb0] sm:$0xff]
  %v50 = vld [vmem:[%s0 + $0xb8] sm:$0xff]
  %v51 = vld [vmem:[%s0 + $0xc0] sm:$0xff]
  %v52 = vld [vmem:[%s0 + $0xc8] sm:$0xff]
  %v53 = vld [vmem:[%s0 + $0xd0] sm:$0xff]
  %v54 = vld [vmem:[%s0 + $0xd8] sm:$0xff]
  %v55 = vld [vmem:[%s0 + $0xe0] sm:$0xff]
  %v56 = vld [vmem:[%s0 + $0xe8] sm:$0xff]
  %v57 = vld [vmem:[%s0 + $0xf0] sm:$0xff]
  %v58 = vld [vmem:[%s0 + $0xf8] sm:$0xff]
  %v59 = vpack.c.bf16 %v28, %v27
  %v60 = vpack.c.bf16 %v30, %v29
  %v61 = vpack.c.bf16 %v32, %v31
  %v62 = vpack.c.bf16 %v34, %v33
  %v63 = vpack.c.bf16 %v36, %v35
  %v64 = vpack.c.bf16 %v38, %v37
  %v65 = vpack.c.bf16 %v40, %v39
  %v66 = vpack.c.bf16 %v42, %v41
  %v67 = vpack.c.bf16 %v44, %v43
  %v68 = vpack.c.bf16 %v46, %v45
  %v69 = vpack.c.bf16 %v48, %v47
  %v70 = vpack.c.bf16 %v50, %v49
  %v71 = vpack.c.bf16 %v52, %v51
  %v72 = vpack.c.bf16 %v54, %v53
  %v73 = vpack.c.bf16 %v56, %v55
  %v74 = vpack.c.bf16 %v58, %v57
  %v75 = vld [vmem:[%s1] sm:$0xff]
  %v76 = vld [vmem:[%s1 + $0x8] sm:$0xff]
  %v77 = vld [vmem:[%s1 + $0x10] sm:$0xff]
  %v78 = vld [vmem:[%s1 + $0x18] sm:$0xff]
  %v79 = vld [vmem:[%s1 + $0x20] sm:$0xff]
  %v80 = vld [vmem:[%s1 + $0x28] sm:$0xff]
  %v81 = vld [vmem:[%s1 + $0x30] sm:$0xff]
  %v82 = vld [vmem:[%s1 + $0x38] sm:$0xff]
  %v83 = vld [vmem:[%s2] sm:$0x3]
  %v85 = vlaneseq
  %v86 = vshrl.u32 %v85, 7
  %v87 = vsub.s32 0, %v86
  %v88 = vrot.slane %v83, %v87
  %v89 = vlaneseq
  %v90 = vshrl.u32 %v89, 7
  %v91 = vsub.s32 1, %v90
  %v92 = vrot.slane %v83, %v91
  %v103 = vunpack.c.l.b16 %v75
  %v104 = vunpack.c.h.b16 %v75
  %v105 = vunpack.c.l.b16 %v76
  %v106 = vunpack.c.h.b16 %v76
  %v107 = vunpack.c.l.b16 %v77
  %v108 = vunpack.c.h.b16 %v77
  %v109 = vunpack.c.l.b16 %v78
  %v110 = vunpack.c.h.b16 %v78
  %v111 = vunpack.c.l.b16 %v79
  %v112 = vunpack.c.h.b16 %v79
  %v113 = vunpack.c.l.b16 %v80
  %v114 = vunpack.c.h.b16 %v80
  %v115 = vunpack.c.l.b16 %v81
  %v116 = vunpack.c.h.b16 %v81
  %v117 = vunpack.c.l.b16 %v82
  %v118 = vunpack.c.h.b16 %v82
  %v119 = vpack.c.b16 %v105, %v103
  %v120 = vpack.c.b16 %v106, %v104
  %v121 = vpack.c.b16 %v109, %v107
  %v122 = vpack.c.b16 %v110, %v108
  %v123 = vpack.c.b16 %v113, %v111
  %v124 = vpack.c.b16 %v114, %v112
  %v125 = vpack.c.b16 %v117, %v115
  %v126 = vpack.c.b16 %v118, %v116
  %vm135 = vcmask 523264
  %v137 = vsel %vm135, %v59, 0
  %v140 = vsel %vm135, %v60, 0
  %v143 = vsel %vm135, %v61, 0
  %v146 = vsel %vm135, %v62, 0
  %v149 = vsel %vm135, %v63, 0
  %v152 = vsel %vm135, %v64, 0
  %v155 = vsel %vm135, %v65, 0
  %v158 = vsel %vm135, %v66, 0
  %v161 = vsel %vm135, %v67, 0
  %v164 = vsel %vm135, %v68, 0
  %v167 = vsel %vm135, %v69, 0
  %v170 = vsel %vm135, %v70, 0
  %v173 = vsel %vm135, %v71, 0
  %v176 = vsel %vm135, %v72, 0
  %v179 = vsel %vm135, %v73, 0
  %v182 = vsel %vm135, %v74, 0
  %184 = vmatprep.subr.bf16.mxu0 %v120
  %185 = vmatpush1.bf16.msra.mxu0 %v119
  %186 = vmatprep.subr.bf16.mxu0 %v122
  %187 = vmatpush1.bf16.msra.mxu0 %v121
  %188 = vmatprep.subr.bf16.mxu0 %v124
  %189 = vmatpush1.bf16.msra.mxu0 %v123
  %190 = vmatprep.subr.bf16.mxu0 %v126
  %191 = vmatpush1.bf16.msra.mxu0 %v125
  %192 = vmatprep.subr.bf16.mxu0 0
  %193 = vmatpush1.bf16.msra.mxu0 0
  %194 = vmatprep.subr.bf16.mxu0 0
  %195 = vmatpush1.bf16.msra.mxu0 0
  %196 = vmatprep.subr.bf16.mxu0 0
  %197 = vmatpush1.bf16.msra.mxu0 0
  %198 = vmatprep.subr.bf16.mxu0 0
  %199 = vmatpush1.bf16.msra.mxu0 0
  %200 = vmatprep.subr.bf16.mxu0 0
  %201 = vmatpush1.bf16.msra.mxu0 0
  %202 = vmatprep.subr.bf16.mxu0 0
  %203 = vmatpush1.bf16.msra.mxu0 0
  %204 = vmatprep.subr.bf16.mxu0 0
  %205 = vmatpush1.bf16.msra.mxu0 0
  %206 = vmatprep.subr.bf16.mxu0 0
  %207 = vmatpush1.bf16.msra.mxu0 0
  %208 = vmatprep.subr.bf16.mxu0 0
  %209 = vmatpush1.bf16.msra.mxu0 0
  %210 = vmatprep.subr.bf16.mxu0 0
  %211 = vmatpush1.bf16.msra.mxu0 0
  %212 = vmatprep.subr.bf16.mxu0 0
  %213 = vmatpush1.bf16.msra.mxu0 0
  %214 = vmatprep.subr.bf16.mxu0 0
  %215 = vmatpush1.bf16.msra.mxu0 0
  %216 = vmatprep.mubr.bf16.mxu0 0
  %217 = vmatmul.mubr.bf16.gmra.mrb[0].mxu0 %v137
  %v218 = vpop.f32.mrb[0].mxu0
  %v219 = vadd.f32 %v88, %v218
  %v220 = vpop.f32.mrb[0].mxu0
  %v221 = vadd.f32 %v92, %v220
  %v222 = vpop.f32.mrb[0].mxu0
  %v223 = vadd.f32 %v88, %v222
  %v224 = vpop.f32.mrb[0].mxu0
  %v225 = vadd.f32 %v92, %v224
  %226 = vmatprep.mubr.bf16.mxu0 0
  %227 = vmatmul.mubr.bf16.gmra.mrb[0].mxu0 %v140
  %v228 = vpop.f32.mrb[0].mxu0
  %v229 = vadd.f32 %v88, %v228
  %v230 = vpop.f32.mrb[0].mxu0
  %v231 = vadd.f32 %v92, %v230
  %v232 = vpop.f32.mrb[0].mxu0
  %v233 = vadd.f32 %v88, %v232
  %v234 = vpop.f32.mrb[0].mxu0
  %v235 = vadd.f32 %v92, %v234
  %236 = vmatprep.mubr.bf16.mxu0 0
  %237 = vmatmul.mubr.bf16.gmra.mrb[0].mxu0 %v143
  %v238 = vpop.f32.mrb[0].mxu0
  %v239 = vadd.f32 %v88, %v238
  %v240 = vpop.f32.mrb[0].mxu0
  %v241 = vadd.f32 %v92, %v240
  %v242 = vpop.f32.mrb[0].mxu0
  %v243 = vadd.f32 %v88, %v242
  %v244 = vpop.f32.mrb[0].mxu0
  %v245 = vadd.f32 %v92, %v244
  %246 = vmatprep.mubr.bf16.mxu0 0
  %247 = vmatmul.mubr.bf16.gmra.mrb[0].mxu0 %v146
  %v248 = vpop.f32.mrb[0].mxu0
  %v249 = vadd.f32 %v88, %v248
  %v250 = vpop.f32.mrb[0].mxu0
  %v251 = vadd.f32 %v92, %v250
  %v252 = vpop.f32.mrb[0].mxu0
  %v253 = vadd.f32 %v88, %v252
  %v254 = vpop.f32.mrb[0].mxu0
  %v255 = vadd.f32 %v92, %v254
  %256 = vmatprep.mubr.bf16.mxu0 0
  %257 = vmatmul.mubr.bf16.gmra.mrb[0].mxu0 %v149
  %v258 = vpop.f32.mrb[0].mxu0
  %v259 = vadd.f32 %v88, %v258
  %v260 = vpop.f32.mrb[0].mxu0
  %v261 = vadd.f32 %v92, %v260
  %v262 = vpop.f32.mrb[0].mxu0
  %v263 = vadd.f32 %v88, %v262
  %v264 = vpop.f32.mrb[0].mxu0
  %v265 = vadd.f32 %v92, %v264
  %266 = vmatprep.mubr.bf16.mxu0 0
  %267 = vmatmul.mubr.bf16.gmra.mrb[0].mxu0 %v152
  %v268 = vpop.f32.mrb[0].mxu0
  %v269 = vadd.f32 %v88, %v268
  %v270 = vpop.f32.mrb[0].mxu0
  %v271 = vadd.f32 %v92, %v270
  %v272 = vpop.f32.mrb[0].mxu0
  %v273 = vadd.f32 %v88, %v272
  %v274 = vpop.f32.mrb[0].mxu0
  %v275 = vadd.f32 %v92, %v274
  %276 = vmatprep.mubr.bf16.mxu0 0
  %277 = vmatmul.mubr.bf16.gmra.mrb[0].mxu0 %v155
  %v278 = vpop.f32.mrb[0].mxu0
  %v279 = vadd.f32 %v88, %v278
  %v280 = vpop.f32.mrb[0].mxu0
  %v281 = vadd.f32 %v92, %v280
  %v282 = vpop.f32.mrb[0].mxu0
  %v283 = vadd.f32 %v88, %v282
  %v284 = vpop.f32.mrb[0].mxu0
  %v285 = vadd.f32 %v92, %v284
  %286 = vmatprep.mubr.bf16.mxu0 0
  %287 = vmatmul.mubr.bf16.gmra.mrb[0].mxu0 %v158
  %v288 = vpop.f32.mrb[0].mxu0
  %v289 = vadd.f32 %v88, %v288
  %v290 = vpop.f32.mrb[0].mxu0
  %v291 = vadd.f32 %v92, %v290
  %v292 = vpop.f32.mrb[0].mxu0
  %v293 = vadd.f32 %v88, %v292
  %v294 = vpop.f32.mrb[0].mxu0
  %v295 = vadd.f32 %v92, %v294
  %296 = vmatprep.mubr.bf16.mxu0 0
  %297 = vmatmul.mubr.bf16.gmra.mrb[0].mxu0 %v161
  %v298 = vpop.f32.mrb[0].mxu0
  %v299 = vadd.f32 %v88, %v298
  %v300 = vpop.f32.mrb[0].mxu0
  %v301 = vadd.f32 %v92, %v300
  %v302 = vpop.f32.mrb[0].mxu0
  %v303 = vadd.f32 %v88, %v302
  %v304 = vpop.f32.mrb[0].mxu0
  %v305 = vadd.f32 %v92, %v304
  %306 = vmatprep.mubr.bf16.mxu0 0
  %307 = vmatmul.mubr.bf16.gmra.mrb[0].mxu0 %v164
  %v308 = vpop.f32.mrb[0].mxu0
  %v309 = vadd.f32 %v88, %v308
  %v310 = vpop.f32.mrb[0].mxu0
  %v311 = vadd.f32 %v92, %v310
  %v312 = vpop.f32.mrb[0].mxu0
  %v313 = vadd.f32 %v88, %v312
  %v314 = vpop.f32.mrb[0].mxu0
  %v315 = vadd.f32 %v92, %v314
  %316 = vmatprep.mubr.bf16.mxu0 0
  %317 = vmatmul.mubr.bf16.gmra.mrb[0].mxu0 %v167
  %v318 = vpop.f32.mrb[0].mxu0
  %v319 = vadd.f32 %v88, %v318
  %v320 = vpop.f32.mrb[0].mxu0
  %v321 = vadd.f32 %v92, %v320
  %v322 = vpop.f32.mrb[0].mxu0
  %v323 = vadd.f32 %v88, %v322
  %v324 = vpop.f32.mrb[0].mxu0
  %v325 = vadd.f32 %v92, %v324
  %326 = vmatprep.mubr.bf16.mxu0 0
  %327 = vmatmul.mubr.bf16.gmra.mrb[0].mxu0 %v170
  %v328 = vpop.f32.mrb[0].mxu0
  %v329 = vadd.f32 %v88, %v328
  %v330 = vpop.f32.mrb[0].mxu0
  %v331 = vadd.f32 %v92, %v330
  %v332 = vpop.f32.mrb[0].mxu0
  %v333 = vadd.f32 %v88, %v332
  %v334 = vpop.f32.mrb[0].mxu0
  %v335 = vadd.f32 %v92, %v334
  %336 = vmatprep.mubr.bf16.mxu0 0
  %337 = vmatmul.mubr.bf16.gmra.mrb[0].mxu0 %v173
  %v338 = vpop.f32.mrb[0].mxu0
  %v339 = vadd.f32 %v88, %v338
  %v340 = vpop.f32.mrb[0].mxu0
  %v341 = vadd.f32 %v92, %v340
  %v342 = vpop.f32.mrb[0].mxu0
  %v343 = vadd.f32 %v88, %v342
  %v344 = vpop.f32.mrb[0].mxu0
  %v345 = vadd.f32 %v92, %v344
  %346 = vmatprep.mubr.bf16.mxu0 0
  %347 = vmatmul.mubr.bf16.gmra.mrb[0].mxu0 %v176
  %v348 = vpop.f32.mrb[0].mxu0
  %v349 = vadd.f32 %v88, %v348
  %v350 = vpop.f32.mrb[0].mxu0
  %v351 = vadd.f32 %v92, %v350
  %v352 = vpop.f32.mrb[0].mxu0
  %v353 = vadd.f32 %v88, %v352
  %v354 = vpop.f32.mrb[0].mxu0
  %v355 = vadd.f32 %v92, %v354
  %356 = vmatprep.mubr.bf16.mxu0 0
  %357 = vmatmul.mubr.bf16.gmra.mrb[0].mxu0 %v179
  %v358 = vpop.f32.mrb[0].mxu0
  %v359 = vadd.f32 %v88, %v358
  %v360 = vpop.f32.mrb[0].mxu0
  %v361 = vadd.f32 %v92, %v360
  %v362 = vpop.f32.mrb[0].mxu0
  %v363 = vadd.f32 %v88, %v362
  %v364 = vpop.f32.mrb[0].mxu0
  %v365 = vadd.f32 %v92, %v364
  %366 = vmatprep.mubr.bf16.mxu0 0
  %367 = vmatmul.mubr.bf16.gmra.mrb[0].mxu0 %v182
  %v368 = vpop.f32.mrb[0].mxu0
  %v369 = vadd.f32 %v88, %v368
  %v370 = vpop.f32.mrb[0].mxu0
  %v371 = vadd.f32 %v92, %v370
  %v372 = vpop.f32.mrb[0].mxu0
  %v373 = vadd.f32 %v88, %v372
  %v374 = vpop.f32.mrb[0].mxu0
  %v375 = vadd.f32 %v92, %v374
  %376 = vdwg.mxu0
  %v377 = vmax.f32 %v219, 0.0
  %v378 = vmax.f32 %v221, 0.0
  %v379 = vmax.f32 %v223, 0.0
  %v380 = vmax.f32 %v225, 0.0
  %v381 = vmax.f32 %v229, 0.0
  %v382 = vmax.f32 %v231, 0.0
  %v383 = vmax.f32 %v233, 0.0
  %v384 = vmax.f32 %v235, 0.0
  %v385 = vmax.f32 %v239, 0.0
  %v386 = vmax.f32 %v241, 0.0
  %v387 = vmax.f32 %v243, 0.0
  %v388 = vmax.f32 %v245, 0.0
  %v389 = vmax.f32 %v249, 0.0
  %v390 = vmax.f32 %v251, 0.0
  %v391 = vmax.f32 %v253, 0.0
  %v392 = vmax.f32 %v255, 0.0
  %v393 = vmax.f32 %v259, 0.0
  %v394 = vmax.f32 %v261, 0.0
  %v395 = vmax.f32 %v263, 0.0
  %v396 = vmax.f32 %v265, 0.0
  %v397 = vmax.f32 %v269, 0.0
  %v398 = vmax.f32 %v271, 0.0
  %v399 = vmax.f32 %v273, 0.0
  %v400 = vmax.f32 %v275, 0.0
  %v401 = vmax.f32 %v279, 0.0
  %v402 = vmax.f32 %v281, 0.0
  %v403 = vmax.f32 %v283, 0.0
  %v404 = vmax.f32 %v285, 0.0
  %v405 = vmax.f32 %v289, 0.0
  %v406 = vmax.f32 %v291, 0.0
  %v407 = vmax.f32 %v293, 0.0
  %v408 = vmax.f32 %v295, 0.0
  %v409 = vmax.f32 %v299, 0.0
  %v410 = vmax.f32 %v301, 0.0
  %v411 = vmax.f32 %v303, 0.0
  %v412 = vmax.f32 %v305, 0.0
  %v413 = vmax.f32 %v309, 0.0
  %v414 = vmax.f32 %v311, 0.0
  %v415 = vmax.f32 %v313, 0.0
  %v416 = vmax.f32 %v315, 0.0
  %v417 = vmax.f32 %v319, 0.0
  %v418 = vmax.f32 %v321, 0.0
  %v419 = vmax.f32 %v323, 0.0
  %v420 = vmax.f32 %v325, 0.0
  %v421 = vmax.f32 %v329, 0.0
  %v422 = vmax.f32 %v331, 0.0
  %v423 = vmax.f32 %v333, 0.0
  %v424 = vmax.f32 %v335, 0.0
  %v425 = vmax.f32 %v339, 0.0
  %v426 = vmax.f32 %v341, 0.0
  %v427 = vmax.f32 %v343, 0.0
  %v428 = vmax.f32 %v345, 0.0
  %v429 = vmax.f32 %v349, 0.0
  %v430 = vmax.f32 %v351, 0.0
  %v431 = vmax.f32 %v353, 0.0
  %v432 = vmax.f32 %v355, 0.0
  %v433 = vmax.f32 %v359, 0.0
  %v434 = vmax.f32 %v361, 0.0
  %v435 = vmax.f32 %v363, 0.0
  %v436 = vmax.f32 %v365, 0.0
  %v437 = vmax.f32 %v369, 0.0
  %v438 = vmax.f32 %v371, 0.0
  %v439 = vmax.f32 %v373, 0.0
  %v440 = vmax.f32 %v375, 0.0
  %v441 = vpack.c.bf16 %v379, %v377
  %v442 = vpack.c.bf16 %v380, %v378
  %v443 = vpack.c.bf16 %v383, %v381
  %v444 = vpack.c.bf16 %v384, %v382
  %v445 = vpack.c.bf16 %v387, %v385
  %v446 = vpack.c.bf16 %v388, %v386
  %v447 = vpack.c.bf16 %v391, %v389
  %v448 = vpack.c.bf16 %v392, %v390
  %v449 = vpack.c.bf16 %v395, %v393
  %v450 = vpack.c.bf16 %v396, %v394
  %v451 = vpack.c.bf16 %v399, %v397
  %v452 = vpack.c.bf16 %v400, %v398
  %v453 = vpack.c.bf16 %v403, %v401
  %v454 = vpack.c.bf16 %v404, %v402
  %v455 = vpack.c.bf16 %v407, %v405
  %v456 = vpack.c.bf16 %v408, %v406
  %v457 = vpack.c.bf16 %v411, %v409
  %v458 = vpack.c.bf16 %v412, %v410
  %v459 = vpack.c.bf16 %v415, %v413
  %v460 = vpack.c.bf16 %v416, %v414
  %v461 = vpack.c.bf16 %v419, %v417
  %v462 = vpack.c.bf16 %v420, %v418
  %v463 = vpack.c.bf16 %v423, %v421
  %v464 = vpack.c.bf16 %v424, %v422
  %v465 = vpack.c.bf16 %v427, %v425
  %v466 = vpack.c.bf16 %v428, %v426
  %v467 = vpack.c.bf16 %v431, %v429
  %v468 = vpack.c.bf16 %v432, %v430
  %v469 = vpack.c.bf16 %v435, %v433
  %v470 = vpack.c.bf16 %v436, %v434
  %v471 = vpack.c.bf16 %v439, %v437
  %v472 = vpack.c.bf16 %v440, %v438
  %v473 = vld [vmem:[%s3] sm:$0xff]
  %v474 = vld [vmem:[%s3 + $0x8] sm:$0xff]
  %v475 = vld [vmem:[%s3 + $0x10] sm:$0xff]
  %v476 = vld [vmem:[%s3 + $0x18] sm:$0xff]
  %v477 = vld [vmem:[%s3 + $0x20] sm:$0xff]
  %v478 = vld [vmem:[%s3 + $0x28] sm:$0xff]
  %v479 = vld [vmem:[%s3 + $0x30] sm:$0xff]
  %v480 = vld [vmem:[%s3 + $0x38] sm:$0xff]
  %v481 = vld [vmem:[%s3 + $0x40] sm:$0xff]
  %v482 = vld [vmem:[%s3 + $0x48] sm:$0xff]
  %v483 = vld [vmem:[%s3 + $0x50] sm:$0xff]
  %v484 = vld [vmem:[%s3 + $0x58] sm:$0xff]
  %v485 = vld [vmem:[%s3 + $0x60] sm:$0xff]
  %v486 = vld [vmem:[%s3 + $0x68] sm:$0xff]
  %v487 = vld [vmem:[%s3 + $0x70] sm:$0xff]
  %v488 = vld [vmem:[%s3 + $0x78] sm:$0xff]
  %v489 = vld [vmem:[%s3 + $0x80] sm:$0xff]
  %v490 = vld [vmem:[%s3 + $0x88] sm:$0xff]
  %v491 = vld [vmem:[%s3 + $0x90] sm:$0xff]
  %v492 = vld [vmem:[%s3 + $0x98] sm:$0xff]
  %v493 = vld [vmem:[%s3 + $0xa0] sm:$0xff]
  %v494 = vld [vmem:[%s3 + $0xa8] sm:$0xff]
  %v495 = vld [vmem:[%s3 + $0xb0] sm:$0xff]
  %v496 = vld [vmem:[%s3 + $0xb8] sm:$0xff]
  %v497 = vld [vmem:[%s3 + $0xc0] sm:$0xff]
  %v498 = vld [vmem:[%s3 + $0xc8] sm:$0xff]
  %v499 = vld [vmem:[%s3 + $0xd0] sm:$0xff]
  %v500 = vld [vmem:[%s3 + $0xd8] sm:$0xff]
  %v501 = vld [vmem:[%s3 + $0xe0] sm:$0xff]
  %v502 = vld [vmem:[%s3 + $0xe8] sm:$0xff]
  %v503 = vld [vmem:[%s3 + $0xf0] sm:$0xff]
  %v504 = vld [vmem:[%s3 + $0xf8] sm:$0xff]
  %v505 = vld [vmem:[%s4] sm:$0x3]
  %v507 = vlaneseq
  %v508 = vshrl.u32 %v507, 7
  %v509 = vsub.s32 0, %v508
  %v510 = vrot.slane %v505, %v509
  %v511 = vlaneseq
  %v512 = vshrl.u32 %v511, 7
  %v513 = vsub.s32 1, %v512
  %v514 = vrot.slane %v505, %v513
  %v549 = vunpack.c.l.b16 %v473
  %v550 = vunpack.c.h.b16 %v473
  %v551 = vunpack.c.l.b16 %v474
  %v552 = vunpack.c.h.b16 %v474
  %v553 = vunpack.c.l.b16 %v475
  %v554 = vunpack.c.h.b16 %v475
  %v555 = vunpack.c.l.b16 %v476
  %v556 = vunpack.c.h.b16 %v476
  %v557 = vunpack.c.l.b16 %v477
  %v558 = vunpack.c.h.b16 %v477
  %v559 = vunpack.c.l.b16 %v478
  %v560 = vunpack.c.h.b16 %v478
  %v561 = vunpack.c.l.b16 %v479
  %v562 = vunpack.c.h.b16 %v479
  %v563 = vunpack.c.l.b16 %v480
  %v564 = vunpack.c.h.b16 %v480
  %v565 = vunpack.c.l.b16 %v481
  %v566 = vunpack.c.h.b16 %v481
  %v567 = vunpack.c.l.b16 %v482
  %v568 = vunpack.c.h.b16 %v482
  %v569 = vunpack.c.l.b16 %v483
  %v570 = vunpack.c.h.b16 %v483
  %v571 = vunpack.c.l.b16 %v484
  %v572 = vunpack.c.h.b16 %v484
  %v573 = vunpack.c.l.b16 %v485
  %v574 = vunpack.c.h.b16 %v485
  %v575 = vunpack.c.l.b16 %v486
  %v576 = vunpack.c.h.b16 %v486
  %v577 = vunpack.c.l.b16 %v487
  %v578 = vunpack.c.h.b16 %v487
  %v579 = vunpack.c.l.b16 %v488
  %v580 = vunpack.c.h.b16 %v488
  %v581 = vunpack.c.l.b16 %v489
  %v582 = vunpack.c.h.b16 %v489
  %v583 = vunpack.c.l.b16 %v490
  %v584 = vunpack.c.h.b16 %v490
  %v585 = vunpack.c.l.b16 %v491
  %v586 = vunpack.c.h.b16 %v491
  %v587 = vunpack.c.l.b16 %v492
  %v588 = vunpack.c.h.b16 %v492
  %v589 = vunpack.c.l.b16 %v493
  %v590 = vunpack.c.h.b16 %v493
  %v591 = vunpack.c.l.b16 %v494
  %v592 = vunpack.c.h.b16 %v494
  %v593 = vunpack.c.l.b16 %v495
  %v594 = vunpack.c.h.b16 %v495
  %v595 = vunpack.c.l.b16 %v496
  %v596 = vunpack.c.h.b16 %v496
  %v597 = vunpack.c.l.b16 %v497
  %v598 = vunpack.c.h.b16 %v497
  %v599 = vunpack.c.l.b16 %v498
  %v600 = vunpack.c.h.b16 %v498
  %v601 = vunpack.c.l.b16 %v499
  %v602 = vunpack.c.h.b16 %v499
  %v603 = vunpack.c.l.b16 %v500
  %v604 = vunpack.c.h.b16 %v500
  %v605 = vunpack.c.l.b16 %v501
  %v606 = vunpack.c.h.b16 %v501
  %v607 = vunpack.c.l.b16 %v502
  %v608 = vunpack.c.h.b16 %v502
  %v609 = vunpack.c.l.b16 %v503
  %v610 = vunpack.c.h.b16 %v503
  %v611 = vunpack.c.l.b16 %v504
  %v612 = vunpack.c.h.b16 %v504
  %v613 = vpack.c.b16 %v551, %v549
  %v614 = vpack.c.b16 %v552, %v550
  %v615 = vpack.c.b16 %v555, %v553
  %v616 = vpack.c.b16 %v556, %v554
  %v617 = vpack.c.b16 %v559, %v557
  %v618 = vpack.c.b16 %v560, %v558
  %v619 = vpack.c.b16 %v563, %v561
  %v620 = vpack.c.b16 %v564, %v562
  %v621 = vpack.c.b16 %v567, %v565
  %v622 = vpack.c.b16 %v568, %v566
  %v623 = vpack.c.b16 %v571, %v569
  %v624 = vpack.c.b16 %v572, %v570
  %v625 = vpack.c.b16 %v575, %v573
  %v626 = vpack.c.b16 %v576, %v574
  %v627 = vpack.c.b16 %v579, %v577
  %v628 = vpack.c.b16 %v580, %v578
  %v629 = vpack.c.b16 %v583, %v581
  %v630 = vpack.c.b16 %v584, %v582
  %v631 = vpack.c.b16 %v587, %v585
  %v632 = vpack.c.b16 %v588, %v586
  %v633 = vpack.c.b16 %v591, %v589
  %v634 = vpack.c.b16 %v592, %v590
  %v635 = vpack.c.b16 %v595, %v593
  %v636 = vpack.c.b16 %v596, %v594
  %v637 = vpack.c.b16 %v599, %v597
  %v638 = vpack.c.b16 %v600, %v598
  %v639 = vpack.c.b16 %v603, %v601
  %v640 = vpack.c.b16 %v604, %v602
  %v641 = vpack.c.b16 %v607, %v605
  %v642 = vpack.c.b16 %v608, %v606
  %v643 = vpack.c.b16 %v611, %v609
  %v644 = vpack.c.b16 %v612, %v610
  %677 = vmatprep.subr.bf16.mxu0 %v614
  %678 = vmatpush1.bf16.msra.mxu0 %v613
  %679 = vmatprep.subr.bf16.mxu0 %v616
  %680 = vmatpush1.bf16.msra.mxu0 %v615
  %681 = vmatprep.subr.bf16.mxu0 %v618
  %682 = vmatpush1.bf16.msra.mxu0 %v617
  %683 = vmatprep.subr.bf16.mxu0 %v620
  %684 = vmatpush1.bf16.msra.mxu0 %v619
  %685 = vmatprep.subr.bf16.mxu0 %v622
  %686 = vmatpush1.bf16.msra.mxu0 %v621
  %687 = vmatprep.subr.bf16.mxu0 %v624
  %688 = vmatpush1.bf16.msra.mxu0 %v623
  %689 = vmatprep.subr.bf16.mxu0 %v626
  %690 = vmatpush1.bf16.msra.mxu0 %v625
  %691 = vmatprep.subr.bf16.mxu0 %v628
  %692 = vmatpush1.bf16.msra.mxu0 %v627
  %693 = vmatprep.subr.bf16.mxu0 %v630
  %694 = vmatpush1.bf16.msra.mxu0 %v629
  %695 = vmatprep.subr.bf16.mxu0 %v632
  %696 = vmatpush1.bf16.msra.mxu0 %v631
  %697 = vmatprep.subr.bf16.mxu0 %v634
  %698 = vmatpush1.bf16.msra.mxu0 %v633
  %699 = vmatprep.subr.bf16.mxu0 %v636
  %700 = vmatpush1.bf16.msra.mxu0 %v635
  %701 = vmatprep.subr.bf16.mxu0 %v638
  %702 = vmatpush1.bf16.msra.mxu0 %v637
  %703 = vmatprep.subr.bf16.mxu0 %v640
  %704 = vmatpush1.bf16.msra.mxu0 %v639
  %705 = vmatprep.subr.bf16.mxu0 %v642
  %706 = vmatpush1.bf16.msra.mxu0 %v641
  %707 = vmatprep.subr.bf16.mxu0 %v644
  %708 = vmatpush1.bf16.msra.mxu0 %v643
  %709 = vmatprep.mubr.bf16.mxu0 %v442
  %710 = vmatmul.mubr.bf16.gmra.mrb[0].mxu0 %v441
  %v711 = vpop.f32.mrb[0].mxu0
  %v712 = vadd.f32 %v510, %v711
  %v713 = vpop.f32.mrb[0].mxu0
  %v714 = vadd.f32 %v514, %v713
  %v715 = vpop.f32.mrb[0].mxu0
  %v716 = vadd.f32 %v510, %v715
  %v717 = vpop.f32.mrb[0].mxu0
  %v718 = vadd.f32 %v514, %v717
  %719 = vmatprep.mubr.bf16.mxu0 %v444
  %720 = vmatmul.mubr.bf16.gmra.mrb[0].mxu0 %v443
  %v721 = vpop.f32.mrb[0].mxu0
  %v722 = vadd.f32 %v510, %v721
  %v723 = vpop.f32.mrb[0].mxu0
  %v724 = vadd.f32 %v514, %v723
  %v725 = vpop.f32.mrb[0].mxu0
  %v726 = vadd.f32 %v510, %v725
  %v727 = vpop.f32.mrb[0].mxu0
  %v728 = vadd.f32 %v514, %v727
  %729 = vmatprep.mubr.bf16.mxu0 %v446
  %730 = vmatmul.mubr.bf16.gmra.mrb[0].mxu0 %v445
  %v731 = vpop.f32.mrb[0].mxu0
  %v732 = vadd.f32 %v510, %v731
  %v733 = vpop.f32.mrb[0].mxu0
  %v734 = vadd.f32 %v514, %v733
  %v735 = vpop.f32.mrb[0].mxu0
  %v736 = vadd.f32 %v510, %v735
  %v737 = vpop.f32.mrb[0].mxu0
  %v738 = vadd.f32 %v514, %v737
  %739 = vmatprep.mubr.bf16.mxu0 %v448
  %740 = vmatmul.mubr.bf16.gmra.mrb[0].mxu0 %v447
  %v741 = vpop.f32.mrb[0].mxu0
  %v742 = vadd.f32 %v510, %v741
  %v743 = vpop.f32.mrb[0].mxu0
  %v744 = vadd.f32 %v514, %v743
  %v745 = vpop.f32.mrb[0].mxu0
  %v746 = vadd.f32 %v510, %v745
  %v747 = vpop.f32.mrb[0].mxu0
  %v748 = vadd.f32 %v514, %v747
  %749 = vmatprep.mubr.bf16.mxu0 %v450
  %750 = vmatmul.mubr.bf16.gmra.mrb[0].mxu0 %v449
  %v751 = vpop.f32.mrb[0].mxu0
  %v752 = vadd.f32 %v510, %v751
  %v753 = vpop.f32.mrb[0].mxu0
  %v754 = vadd.f32 %v514, %v753
  %v755 = vpop.f32.mrb[0].mxu0
  %v756 = vadd.f32 %v510, %v755
  %v757 = vpop.f32.mrb[0].mxu0
  %v758 = vadd.f32 %v514, %v757
  %759 = vmatprep.mubr.bf16.mxu0 %v452
  %760 = vmatmul.mubr.bf16.gmra.mrb[0].mxu0 %v451
  %v761 = vpop.f32.mrb[0].mxu0
  %v762 = vadd.f32 %v510, %v761
  %v763 = vpop.f32.mrb[0].mxu0
  %v764 = vadd.f32 %v514, %v763
  %v765 = vpop.f32.mrb[0].mxu0
  %v766 = vadd.f32 %v510, %v765
  %v767 = vpop.f32.mrb[0].mxu0
  %v768 = vadd.f32 %v514, %v767
  %769 = vmatprep.mubr.bf16.mxu0 %v454
  %770 = vmatmul.mubr.bf16.gmra.mrb[0].mxu0 %v453
  %v771 = vpop.f32.mrb[0].mxu0
  %v772 = vadd.f32 %v510, %v771
  %v773 = vpop.f32.mrb[0].mxu0
  %v774 = vadd.f32 %v514, %v773
  %v775 = vpop.f32.mrb[0].mxu0
  %v776 = vadd.f32 %v510, %v775
  %v777 = vpop.f32.mrb[0].mxu0
  %v778 = vadd.f32 %v514, %v777
  %779 = vmatprep.mubr.bf16.mxu0 %v456
  %780 = vmatmul.mubr.bf16.gmra.mrb[0].mxu0 %v455
  %v781 = vpop.f32.mrb[0].mxu0
  %v782 = vadd.f32 %v510, %v781
  %v783 = vpop.f32.mrb[0].mxu0
  %v784 = vadd.f32 %v514, %v783
  %v785 = vpop.f32.mrb[0].mxu0
  %v786 = vadd.f32 %v510, %v785
  %v787 = vpop.f32.mrb[0].mxu0
  %v788 = vadd.f32 %v514, %v787
  %789 = vmatprep.mubr.bf16.mxu0 %v458
  %790 = vmatmul.mubr.bf16.gmra.mrb[0].mxu0 %v457
  %v791 = vpop.f32.mrb[0].mxu0
  %v792 = vadd.f32 %v510, %v791
  %v793 = vpop.f32.mrb[0].mxu0
  %v794 = vadd.f32 %v514, %v793
  %v795 = vpop.f32.mrb[0].mxu0
  %v796 = vadd.f32 %v510, %v795
  %v797 = vpop.f32.mrb[0].mxu0
  %v798 = vadd.f32 %v514, %v797
  %799 = vmatprep.mubr.bf16.mxu0 %v460
  %800 = vmatmul.mubr.bf16.gmra.mrb[0].mxu0 %v459
  %v801 = vpop.f32.mrb[0].mxu0
  %v802 = vadd.f32 %v510, %v801
  %v803 = vpop.f32.mrb[0].mxu0
  %v804 = vadd.f32 %v514, %v803
  %v805 = vpop.f32.mrb[0].mxu0
  %v806 = vadd.f32 %v510, %v805
  %v807 = vpop.f32.mrb[0].mxu0
  %v808 = vadd.f32 %v514, %v807
  %809 = vmatprep.mubr.bf16.mxu0 %v462
  %810 = vmatmul.mubr.bf16.gmra.mrb[0].mxu0 %v461
  %v811 = vpop.f32.mrb[0].mxu0
  %v812 = vadd.f32 %v510, %v811
  %v813 = vpop.f32.mrb[0].mxu0
  %v814 = vadd.f32 %v514, %v813
  %v815 = vpop.f32.mrb[0].mxu0
  %v816 = vadd.f32 %v510, %v815
  %v817 = vpop.f32.mrb[0].mxu0
  %v818 = vadd.f32 %v514, %v817
  %819 = vmatprep.mubr.bf16.mxu0 %v464
  %820 = vmatmul.mubr.bf16.gmra.mrb[0].mxu0 %v463
  %v821 = vpop.f32.mrb[0].mxu0
  %v822 = vadd.f32 %v510, %v821
  %v823 = vpop.f32.mrb[0].mxu0
  %v824 = vadd.f32 %v514, %v823
  %v825 = vpop.f32.mrb[0].mxu0
  %v826 = vadd.f32 %v510, %v825
  %v827 = vpop.f32.mrb[0].mxu0
  %v828 = vadd.f32 %v514, %v827
  %829 = vmatprep.mubr.bf16.mxu0 %v466
  %830 = vmatmul.mubr.bf16.gmra.mrb[0].mxu0 %v465
  %v831 = vpop.f32.mrb[0].mxu0
  %v832 = vadd.f32 %v510, %v831
  %v833 = vpop.f32.mrb[0].mxu0
  %v834 = vadd.f32 %v514, %v833
  %v835 = vpop.f32.mrb[0].mxu0
  %v836 = vadd.f32 %v510, %v835
  %v837 = vpop.f32.mrb[0].mxu0
  %v838 = vadd.f32 %v514, %v837
  %839 = vmatprep.mubr.bf16.mxu0 %v468
  %840 = vmatmul.mubr.bf16.gmra.mrb[0].mxu0 %v467
  %v841 = vpop.f32.mrb[0].mxu0
  %v842 = vadd.f32 %v510, %v841
  %v843 = vpop.f32.mrb[0].mxu0
  %v844 = vadd.f32 %v514, %v843
  %v845 = vpop.f32.mrb[0].mxu0
  %v846 = vadd.f32 %v510, %v845
  %v847 = vpop.f32.mrb[0].mxu0
  %v848 = vadd.f32 %v514, %v847
  %849 = vmatprep.mubr.bf16.mxu0 %v470
  %850 = vmatmul.mubr.bf16.gmra.mrb[0].mxu0 %v469
  %v851 = vpop.f32.mrb[0].mxu0
  %v852 = vadd.f32 %v510, %v851
  %v853 = vpop.f32.mrb[0].mxu0
  %v854 = vadd.f32 %v514, %v853
  %v855 = vpop.f32.mrb[0].mxu0
  %v856 = vadd.f32 %v510, %v855
  %v857 = vpop.f32.mrb[0].mxu0
  %v858 = vadd.f32 %v514, %v857
  %859 = vmatprep.mubr.bf16.mxu0 %v472
  %860 = vmatmul.mubr.bf16.gmra.mrb[0].mxu0 %v471
  %v861 = vpop.f32.mrb[0].mxu0
  %v862 = vadd.f32 %v510, %v861
  %v863 = vpop.f32.mrb[0].mxu0
  %v864 = vadd.f32 %v514, %v863
  %v865 = vpop.f32.mrb[0].mxu0
  %v866 = vadd.f32 %v510, %v865
  %v867 = vpop.f32.mrb[0].mxu0
  %v868 = vadd.f32 %v514, %v867
  %869 = vdwg.mxu0
  %v870 = vmax.f32 %v712, 0.0
  %v871 = vmax.f32 %v714, 0.0
  %v872 = vmax.f32 %v716, 0.0
  %v873 = vmax.f32 %v718, 0.0
  %v874 = vmax.f32 %v722, 0.0
  %v875 = vmax.f32 %v724, 0.0
  %v876 = vmax.f32 %v726, 0.0
  %v877 = vmax.f32 %v728, 0.0
  %v878 = vmax.f32 %v732, 0.0
  %v879 = vmax.f32 %v734, 0.0
  %v880 = vmax.f32 %v736, 0.0
  %v881 = vmax.f32 %v738, 0.0
  %v882 = vmax.f32 %v742, 0.0
  %v883 = vmax.f32 %v744, 0.0
  %v884 = vmax.f32 %v746, 0.0
  %v885 = vmax.f32 %v748, 0.0
  %v886 = vmax.f32 %v752, 0.0
  %v887 = vmax.f32 %v754, 0.0
  %v888 = vmax.f32 %v756, 0.0
  %v889 = vmax.f32 %v758, 0.0
  %v890 = vmax.f32 %v762, 0.0
  %v891 = vmax.f32 %v764, 0.0
  %v892 = vmax.f32 %v766, 0.0
  %v893 = vmax.f32 %v768, 0.0
  %v894 = vmax.f32 %v772, 0.0
  %v895 = vmax.f32 %v774, 0.0
  %v896 = vmax.f32 %v776, 0.0
  %v897 = vmax.f32 %v778, 0.0
  %v898 = vmax.f32 %v782, 0.0
  %v899 = vmax.f32 %v784, 0.0
  %v900 = vmax.f32 %v786, 0.0
  %v901 = vmax.f32 %v788, 0.0
  %v902 = vmax.f32 %v792, 0.0
  %v903 = vmax.f32 %v794, 0.0
  %v904 = vmax.f32 %v796, 0.0
  %v905 = vmax.f32 %v798, 0.0
  %v906 = vmax.f32 %v802, 0.0
  %v907 = vmax.f32 %v804, 0.0
  %v908 = vmax.f32 %v806, 0.0
  %v909 = vmax.f32 %v808, 0.0
  %v910 = vmax.f32 %v812, 0.0
  %v911 = vmax.f32 %v814, 0.0
  %v912 = vmax.f32 %v816, 0.0
  %v913 = vmax.f32 %v818, 0.0
  %v914 = vmax.f32 %v822, 0.0
  %v915 = vmax.f32 %v824, 0.0
  %v916 = vmax.f32 %v826, 0.0
  %v917 = vmax.f32 %v828, 0.0
  %v918 = vmax.f32 %v832, 0.0
  %v919 = vmax.f32 %v834, 0.0
  %v920 = vmax.f32 %v836, 0.0
  %v921 = vmax.f32 %v838, 0.0
  %v922 = vmax.f32 %v842, 0.0
  %v923 = vmax.f32 %v844, 0.0
  %v924 = vmax.f32 %v846, 0.0
  %v925 = vmax.f32 %v848, 0.0
  %v926 = vmax.f32 %v852, 0.0
  %v927 = vmax.f32 %v854, 0.0
  %v928 = vmax.f32 %v856, 0.0
  %v929 = vmax.f32 %v858, 0.0
  %v930 = vmax.f32 %v862, 0.0
  %v931 = vmax.f32 %v864, 0.0
  %v932 = vmax.f32 %v866, 0.0
  %v933 = vmax.f32 %v868, 0.0
  %v934 = vpack.c.bf16 %v872, %v870
  %v935 = vpack.c.bf16 %v873, %v871
  %v936 = vpack.c.bf16 %v876, %v874
  %v937 = vpack.c.bf16 %v877, %v875
  %v938 = vpack.c.bf16 %v880, %v878
  %v939 = vpack.c.bf16 %v881, %v879
  %v940 = vpack.c.bf16 %v884, %v882
  %v941 = vpack.c.bf16 %v885, %v883
  %v942 = vpack.c.bf16 %v888, %v886
  %v943 = vpack.c.bf16 %v889, %v887
  %v944 = vpack.c.bf16 %v892, %v890
  %v945 = vpack.c.bf16 %v893, %v891
  %v946 = vpack.c.bf16 %v896, %v894
  %v947 = vpack.c.bf16 %v897, %v895
  %v948 = vpack.c.bf16 %v900, %v898
  %v949 = vpack.c.bf16 %v901, %v899
  %v950 = vpack.c.bf16 %v904, %v902
  %v951 = vpack.c.bf16 %v905, %v903
  %v952 = vpack.c.bf16 %v908, %v906
  %v953 = vpack.c.bf16 %v909, %v907
  %v954 = vpack.c.bf16 %v912, %v910
  %v955 = vpack.c.bf16 %v913, %v911
  %v956 = vpack.c.bf16 %v916, %v914
  %v957 = vpack.c.bf16 %v917, %v915
  %v958 = vpack.c.bf16 %v920, %v918
  %v959 = vpack.c.bf16 %v921, %v919
  %v960 = vpack.c.bf16 %v924, %v922
  %v961 = vpack.c.bf16 %v925, %v923
  %v962 = vpack.c.bf16 %v928, %v926
  %v963 = vpack.c.bf16 %v929, %v927
  %v964 = vpack.c.bf16 %v932, %v930
  %v965 = vpack.c.bf16 %v933, %v931
  %v966 = vld [vmem:[%s5] sm:$0xf]
  %v967 = vld [vmem:[%s5 + $0x4] sm:$0xf]
  %v968 = vld [vmem:[%s5 + $0x8] sm:$0xf]
  %v969 = vld [vmem:[%s5 + $0xc] sm:$0xf]
  %v970 = vld [vmem:[%s5 + $0x10] sm:$0xf]
  %v971 = vld [vmem:[%s5 + $0x14] sm:$0xf]
  %v972 = vld [vmem:[%s5 + $0x18] sm:$0xf]
  %v973 = vld [vmem:[%s5 + $0x1c] sm:$0xf]
  %v974 = vld [vmem:[%s5 + $0x20] sm:$0xf]
  %v975 = vld [vmem:[%s5 + $0x24] sm:$0xf]
  %v976 = vld [vmem:[%s5 + $0x28] sm:$0xf]
  %v977 = vld [vmem:[%s5 + $0x2c] sm:$0xf]
  %v978 = vld [vmem:[%s5 + $0x30] sm:$0xf]
  %v979 = vld [vmem:[%s5 + $0x34] sm:$0xf]
  %v980 = vld [vmem:[%s5 + $0x38] sm:$0xf]
  %v981 = vld [vmem:[%s5 + $0x3c] sm:$0xf]
  %v982 = vld [vmem:[%s5 + $0x40] sm:$0xf]
  %v983 = vld [vmem:[%s5 + $0x44] sm:$0xf]
  %v984 = vld [vmem:[%s5 + $0x48] sm:$0xf]
  %v985 = vld [vmem:[%s5 + $0x4c] sm:$0xf]
  %v986 = vld [vmem:[%s5 + $0x50] sm:$0xf]
  %v987 = vld [vmem:[%s5 + $0x54] sm:$0xf]
  %v988 = vld [vmem:[%s5 + $0x58] sm:$0xf]
  %v989 = vld [vmem:[%s5 + $0x5c] sm:$0xf]
  %v990 = vld [vmem:[%s5 + $0x60] sm:$0xf]
  %v991 = vld [vmem:[%s5 + $0x64] sm:$0xf]
  %v992 = vld [vmem:[%s5 + $0x68] sm:$0xf]
  %v993 = vld [vmem:[%s5 + $0x6c] sm:$0xf]
  %v994 = vld [vmem:[%s5 + $0x70] sm:$0xf]
  %v995 = vld [vmem:[%s5 + $0x74] sm:$0xf]
  %v996 = vld [vmem:[%s5 + $0x78] sm:$0xf]
  %v997 = vld [vmem:[%s5 + $0x7c] sm:$0xf]
  %v998 = vld [vmem:[%s6] sm:$0x1]
  %v1000 = vlaneseq
  %v1001 = vshrl.u32 %v1000, 7
  %v1002 = vsub.s32 0, %v1001
  %v1003 = vrot.slane %v998, %v1002
  %v1037 = vunpack.c.l.b16 %v966
  %v1038 = vunpack.c.l.b16 %v967
  %v1039 = vunpack.c.l.b16 %v968
  %v1040 = vunpack.c.l.b16 %v969
  %v1041 = vunpack.c.l.b16 %v970
  %v1042 = vunpack.c.l.b16 %v971
  %v1043 = vunpack.c.l.b16 %v972
  %v1044 = vunpack.c.l.b16 %v973
  %v1045 = vunpack.c.l.b16 %v974
  %v1046 = vunpack.c.l.b16 %v975
  %v1047 = vunpack.c.l.b16 %v976
  %v1048 = vunpack.c.l.b16 %v977
  %v1049 = vunpack.c.l.b16 %v978
  %v1050 = vunpack.c.l.b16 %v979
  %v1051 = vunpack.c.l.b16 %v980
  %v1052 = vunpack.c.l.b16 %v981
  %v1053 = vunpack.c.l.b16 %v982
  %v1054 = vunpack.c.l.b16 %v983
  %v1055 = vunpack.c.l.b16 %v984
  %v1056 = vunpack.c.l.b16 %v985
  %v1057 = vunpack.c.l.b16 %v986
  %v1058 = vunpack.c.l.b16 %v987
  %v1059 = vunpack.c.l.b16 %v988
  %v1060 = vunpack.c.l.b16 %v989
  %v1061 = vunpack.c.l.b16 %v990
  %v1062 = vunpack.c.l.b16 %v991
  %v1063 = vunpack.c.l.b16 %v992
  %v1064 = vunpack.c.l.b16 %v993
  %v1065 = vunpack.c.l.b16 %v994
  %v1066 = vunpack.c.l.b16 %v995
  %v1067 = vunpack.c.l.b16 %v996
  %v1068 = vunpack.c.l.b16 %v997
  %v1069 = vpack.c.b16 %v1038, %v1037
  %v1070 = vpack.c.b16 %v1040, %v1039
  %v1071 = vpack.c.b16 %v1042, %v1041
  %v1072 = vpack.c.b16 %v1044, %v1043
  %v1073 = vpack.c.b16 %v1046, %v1045
  %v1074 = vpack.c.b16 %v1048, %v1047
  %v1075 = vpack.c.b16 %v1050, %v1049
  %v1076 = vpack.c.b16 %v1052, %v1051
  %v1077 = vpack.c.b16 %v1054, %v1053
  %v1078 = vpack.c.b16 %v1056, %v1055
  %v1079 = vpack.c.b16 %v1058, %v1057
  %v1080 = vpack.c.b16 %v1060, %v1059
  %v1081 = vpack.c.b16 %v1062, %v1061
  %v1082 = vpack.c.b16 %v1064, %v1063
  %v1083 = vpack.c.b16 %v1066, %v1065
  %v1084 = vpack.c.b16 %v1068, %v1067
  %1101 = vmatprep.subr.bf16.mxu0 0
  %1102 = vmatpush1.bf16.msra.mxu0 %v1069
  %1103 = vmatprep.subr.bf16.mxu0 0
  %1104 = vmatpush1.bf16.msra.mxu0 %v1070
  %1105 = vmatprep.subr.bf16.mxu0 0
  %1106 = vmatpush1.bf16.msra.mxu0 %v1071
  %1107 = vmatprep.subr.bf16.mxu0 0
  %1108 = vmatpush1.bf16.msra.mxu0 %v1072
  %1109 = vmatprep.subr.bf16.mxu0 0
  %1110 = vmatpush1.bf16.msra.mxu0 %v1073
  %1111 = vmatprep.subr.bf16.mxu0 0
  %1112 = vmatpush1.bf16.msra.mxu0 %v1074
  %1113 = vmatprep.subr.bf16.mxu0 0
  %1114 = vmatpush1.bf16.msra.mxu0 %v1075
  %1115 = vmatprep.subr.bf16.mxu0 0
  %1116 = vmatpush1.bf16.msra.mxu0 %v1076
  %1117 = vmatprep.subr.bf16.mxu0 0
  %1118 = vmatpush1.bf16.msra.mxu0 %v1077
  %1119 = vmatprep.subr.bf16.mxu0 0
  %1120 = vmatpush1.bf16.msra.mxu0 %v1078
  %1121 = vmatprep.subr.bf16.mxu0 0
  %1122 = vmatpush1.bf16.msra.mxu0 %v1079
  %1123 = vmatprep.subr.bf16.mxu0 0
  %1124 = vmatpush1.bf16.msra.mxu0 %v1080
  %1125 = vmatprep.subr.bf16.mxu0 0
  %1126 = vmatpush1.bf16.msra.mxu0 %v1081
  %1127 = vmatprep.subr.bf16.mxu0 0
  %1128 = vmatpush1.bf16.msra.mxu0 %v1082
  %1129 = vmatprep.subr.bf16.mxu0 0
  %1130 = vmatpush1.bf16.msra.mxu0 %v1083
  %1131 = vmatprep.subr.bf16.mxu0 0
  %1132 = vmatpush1.bf16.msra.mxu0 %v1084
  %1133 = vmatprep.mubr.bf16.mxu0 %v935
  %1134 = vmatmul.mubr.bf16.gmra.mrb[0].mxu0 %v934
  %v1135 = vpop.f32.mrb[0].mxu0
  %v1136 = vadd.f32 %v1003, %v1135
  %v1137 = vpop.f32.mrb[0].mxu0
  %v1138 = vpop.f32.mrb[0].mxu0
  %v1139 = vadd.f32 %v1003, %v1138
  %v1140 = vpop.f32.mrb[0].mxu0
  %1141 = vmatprep.mubr.bf16.mxu0 %v937
  %1142 = vmatmul.mubr.bf16.gmra.mrb[0].mxu0 %v936
  %v1143 = vpop.f32.mrb[0].mxu0
  %v1144 = vadd.f32 %v1003, %v1143
  %v1145 = vpop.f32.mrb[0].mxu0
  %v1146 = vpop.f32.mrb[0].mxu0
  %v1147 = vadd.f32 %v1003, %v1146
  %v1148 = vpop.f32.mrb[0].mxu0
  %1149 = vmatprep.mubr.bf16.mxu0 %v939
  %1150 = vmatmul.mubr.bf16.gmra.mrb[0].mxu0 %v938
  %v1151 = vpop.f32.mrb[0].mxu0
  %v1152 = vadd.f32 %v1003, %v1151
  %v1153 = vpop.f32.mrb[0].mxu0
  %v1154 = vpop.f32.mrb[0].mxu0
  %v1155 = vadd.f32 %v1003, %v1154
  %v1156 = vpop.f32.mrb[0].mxu0
  %1157 = vmatprep.mubr.bf16.mxu0 %v941
  %1158 = vmatmul.mubr.bf16.gmra.mrb[0].mxu0 %v940
  %v1159 = vpop.f32.mrb[0].mxu0
  %v1160 = vadd.f32 %v1003, %v1159
  %v1161 = vpop.f32.mrb[0].mxu0
  %v1162 = vpop.f32.mrb[0].mxu0
  %v1163 = vadd.f32 %v1003, %v1162
  %v1164 = vpop.f32.mrb[0].mxu0
  %1165 = vmatprep.mubr.bf16.mxu0 %v943
  %1166 = vmatmul.mubr.bf16.gmra.mrb[0].mxu0 %v942
  %v1167 = vpop.f32.mrb[0].mxu0
  %v1168 = vadd.f32 %v1003, %v1167
  %v1169 = vpop.f32.mrb[0].mxu0
  %v1170 = vpop.f32.mrb[0].mxu0
  %v1171 = vadd.f32 %v1003, %v1170
  %v1172 = vpop.f32.mrb[0].mxu0
  %1173 = vmatprep.mubr.bf16.mxu0 %v945
  %1174 = vmatmul.mubr.bf16.gmra.mrb[0].mxu0 %v944
  %v1175 = vpop.f32.mrb[0].mxu0
  %v1176 = vadd.f32 %v1003, %v1175
  %v1177 = vpop.f32.mrb[0].mxu0
  %v1178 = vpop.f32.mrb[0].mxu0
  %v1179 = vadd.f32 %v1003, %v1178
  %v1180 = vpop.f32.mrb[0].mxu0
  %1181 = vmatprep.mubr.bf16.mxu0 %v947
  %1182 = vmatmul.mubr.bf16.gmra.mrb[0].mxu0 %v946
  %v1183 = vpop.f32.mrb[0].mxu0
  %v1184 = vadd.f32 %v1003, %v1183
  %v1185 = vpop.f32.mrb[0].mxu0
  %v1186 = vpop.f32.mrb[0].mxu0
  %v1187 = vadd.f32 %v1003, %v1186
  %v1188 = vpop.f32.mrb[0].mxu0
  %1189 = vmatprep.mubr.bf16.mxu0 %v949
  %1190 = vmatmul.mubr.bf16.gmra.mrb[0].mxu0 %v948
  %v1191 = vpop.f32.mrb[0].mxu0
  %v1192 = vadd.f32 %v1003, %v1191
  %v1193 = vpop.f32.mrb[0].mxu0
  %v1194 = vpop.f32.mrb[0].mxu0
  %v1195 = vadd.f32 %v1003, %v1194
  %v1196 = vpop.f32.mrb[0].mxu0
  %1197 = vmatprep.mubr.bf16.mxu0 %v951
  %1198 = vmatmul.mubr.bf16.gmra.mrb[0].mxu0 %v950
  %v1199 = vpop.f32.mrb[0].mxu0
  %v1200 = vadd.f32 %v1003, %v1199
  %v1201 = vpop.f32.mrb[0].mxu0
  %v1202 = vpop.f32.mrb[0].mxu0
  %v1203 = vadd.f32 %v1003, %v1202
  %v1204 = vpop.f32.mrb[0].mxu0
  %1205 = vmatprep.mubr.bf16.mxu0 %v953
  %1206 = vmatmul.mubr.bf16.gmra.mrb[0].mxu0 %v952
  %v1207 = vpop.f32.mrb[0].mxu0
  %v1208 = vadd.f32 %v1003, %v1207
  %v1209 = vpop.f32.mrb[0].mxu0
  %v1210 = vpop.f32.mrb[0].mxu0
  %v1211 = vadd.f32 %v1003, %v1210
  %v1212 = vpop.f32.mrb[0].mxu0
  %1213 = vmatprep.mubr.bf16.mxu0 %v955
  %1214 = vmatmul.mubr.bf16.gmra.mrb[0].mxu0 %v954
  %v1215 = vpop.f32.mrb[0].mxu0
  %v1216 = vadd.f32 %v1003, %v1215
  %v1217 = vpop.f32.mrb[0].mxu0
  %v1218 = vpop.f32.mrb[0].mxu0
  %v1219 = vadd.f32 %v1003, %v1218
  %v1220 = vpop.f32.mrb[0].mxu0
  %1221 = vmatprep.mubr.bf16.mxu0 %v957
  %1222 = vmatmul.mubr.bf16.gmra.mrb[0].mxu0 %v956
  %v1223 = vpop.f32.mrb[0].mxu0
  %v1224 = vadd.f32 %v1003, %v1223
  %v1225 = vpop.f32.mrb[0].mxu0
  %v1226 = vpop.f32.mrb[0].mxu0
  %v1227 = vadd.f32 %v1003, %v1226
  %v1228 = vpop.f32.mrb[0].mxu0
  %1229 = vmatprep.mubr.bf16.mxu0 %v959
  %1230 = vmatmul.mubr.bf16.gmra.mrb[0].mxu0 %v958
  %v1231 = vpop.f32.mrb[0].mxu0
  %v1232 = vadd.f32 %v1003, %v1231
  %v1233 = vpop.f32.mrb[0].mxu0
  %v1234 = vpop.f32.mrb[0].mxu0
  %v1235 = vadd.f32 %v1003, %v1234
  %v1236 = vpop.f32.mrb[0].mxu0
  %1237 = vmatprep.mubr.bf16.mxu0 %v961
  %1238 = vmatmul.mubr.bf16.gmra.mrb[0].mxu0 %v960
  %v1239 = vpop.f32.mrb[0].mxu0
  %v1240 = vadd.f32 %v1003, %v1239
  %v1241 = vpop.f32.mrb[0].mxu0
  %v1242 = vpop.f32.mrb[0].mxu0
  %v1243 = vadd.f32 %v1003, %v1242
  %v1244 = vpop.f32.mrb[0].mxu0
  %1245 = vmatprep.mubr.bf16.mxu0 %v963
  %1246 = vmatmul.mubr.bf16.gmra.mrb[0].mxu0 %v962
  %v1247 = vpop.f32.mrb[0].mxu0
  %v1248 = vadd.f32 %v1003, %v1247
  %v1249 = vpop.f32.mrb[0].mxu0
  %v1250 = vpop.f32.mrb[0].mxu0
  %v1251 = vadd.f32 %v1003, %v1250
  %v1252 = vpop.f32.mrb[0].mxu0
  %1253 = vmatprep.mubr.bf16.mxu0 %v965
  %1254 = vmatmul.mubr.bf16.gmra.mrb[0].mxu0 %v964
  %v1255 = vpop.f32.mrb[0].mxu0
  %v1256 = vadd.f32 %v1003, %v1255
  %v1257 = vpop.f32.mrb[0].mxu0
  %v1258 = vpop.f32.mrb[0].mxu0
  %v1259 = vadd.f32 %v1003, %v1258
  %v1260 = vpop.f32.mrb[0].mxu0
  %1261 = vdwg.mxu0
  %1294 = vrot.lane.b32.xlu0 %v1136, 32
  %v1295 = vpop.permute.xlu0 %1294
  %1296 = vrot.lane.b32.xlu0 %v1139, 32
  %v1297 = vpop.permute.xlu0 %1296
  %1298 = vrot.lane.b32.xlu0 %v1144, 32
  %v1299 = vpop.permute.xlu0 %1298
  %1300 = vrot.lane.b32.xlu0 %v1147, 32
  %v1301 = vpop.permute.xlu0 %1300
  %1302 = vrot.lane.b32.xlu0 %v1152, 32
  %v1303 = vpop.permute.xlu0 %1302
  %1304 = vrot.lane.b32.xlu0 %v1155, 32
  %v1305 = vpop.permute.xlu0 %1304
  %1306 = vrot.lane.b32.xlu0 %v1160, 32
  %v1307 = vpop.permute.xlu0 %1306
  %1308 = vrot.lane.b32.xlu0 %v1163, 32
  %v1309 = vpop.permute.xlu0 %1308
  %1310 = vrot.lane.b32.xlu0 %v1168, 32
  %v1311 = vpop.permute.xlu0 %1310
  %1312 = vrot.lane.b32.xlu0 %v1171, 32
  %v1313 = vpop.permute.xlu0 %1312
  %1314 = vrot.lane.b32.xlu0 %v1176, 32
  %v1315 = vpop.permute.xlu0 %1314
  %1316 = vrot.lane.b32.xlu0 %v1179, 32
  %v1317 = vpop.permute.xlu0 %1316
  %1318 = vrot.lane.b32.xlu0 %v1184, 32
  %v1319 = vpop.permute.xlu0 %1318
  %1320 = vrot.lane.b32.xlu0 %v1187, 32
  %v1321 = vpop.permute.xlu0 %1320
  %1322 = vrot.lane.b32.xlu0 %v1192, 32
  %v1323 = vpop.permute.xlu0 %1322
  %1324 = vrot.lane.b32.xlu0 %v1195, 32
  %v1325 = vpop.permute.xlu0 %1324
  %1326 = vrot.lane.b32.xlu0 %v1200, 32
  %v1327 = vpop.permute.xlu0 %1326
  %1328 = vrot.lane.b32.xlu0 %v1203, 32
  %v1329 = vpop.permute.xlu0 %1328
  %1330 = vrot.lane.b32.xlu0 %v1208, 32
  %v1331 = vpop.permute.xlu0 %1330
  %1332 = vrot.lane.b32.xlu0 %v1211, 32
  %v1333 = vpop.permute.xlu0 %1332
  %1334 = vrot.lane.b32.xlu0 %v1216, 32
  %v1335 = vpop.permute.xlu0 %1334
  %1336 = vrot.lane.b32.xlu0 %v1219, 32
  %v1337 = vpop.permute.xlu0 %1336
  %1338 = vrot.lane.b32.xlu0 %v1224, 32
  %v1339 = vpop.permute.xlu0 %1338
  %1340 = vrot.lane.b32.xlu0 %v1227, 32
  %v1341 = vpop.permute.xlu0 %1340
  %1342 = vrot.lane.b32.xlu0 %v1232, 32
  %v1343 = vpop.permute.xlu0 %1342
  %1344 = vrot.lane.b32.xlu0 %v1235, 32
  %v1345 = vpop.permute.xlu0 %1344
  %1346 = vrot.lane.b32.xlu0 %v1240, 32
  %v1347 = vpop.permute.xlu0 %1346
  %1348 = vrot.lane.b32.xlu0 %v1243, 32
  %v1349 = vpop.permute.xlu0 %1348
  %1350 = vrot.lane.b32.xlu0 %v1248, 32
  %v1351 = vpop.permute.xlu0 %1350
  %1352 = vrot.lane.b32.xlu0 %v1251, 32
  %v1353 = vpop.permute.xlu0 %1352
  %1354 = vrot.lane.b32.xlu0 %v1256, 32
  %v1355 = vpop.permute.xlu0 %1354
  %1356 = vrot.lane.b32.xlu0 %v1259, 32
  %v1357 = vpop.permute.xlu0 %1356
  %v1390 = vmul.f32 %v1136, %v1295
  %v1391 = vmul.f32 %v1139, %v1297
  %v1392 = vmul.f32 %v1144, %v1299
  %v1393 = vmul.f32 %v1147, %v1301
  %v1394 = vmul.f32 %v1152, %v1303
  %v1395 = vmul.f32 %v1155, %v1305
  %v1396 = vmul.f32 %v1160, %v1307
  %v1397 = vmul.f32 %v1163, %v1309
  %v1398 = vmul.f32 %v1168, %v1311
  %v1399 = vmul.f32 %v1171, %v1313
  %v1400 = vmul.f32 %v1176, %v1315
  %v1401 = vmul.f32 %v1179, %v1317
  %v1402 = vmul.f32 %v1184, %v1319
  %v1403 = vmul.f32 %v1187, %v1321
  %v1404 = vmul.f32 %v1192, %v1323
  %v1405 = vmul.f32 %v1195, %v1325
  %v1406 = vmul.f32 %v1200, %v1327
  %v1407 = vmul.f32 %v1203, %v1329
  %v1408 = vmul.f32 %v1208, %v1331
  %v1409 = vmul.f32 %v1211, %v1333
  %v1410 = vmul.f32 %v1216, %v1335
  %v1411 = vmul.f32 %v1219, %v1337
  %v1412 = vmul.f32 %v1224, %v1339
  %v1413 = vmul.f32 %v1227, %v1341
  %v1414 = vmul.f32 %v1232, %v1343
  %v1415 = vmul.f32 %v1235, %v1345
  %v1416 = vmul.f32 %v1240, %v1347
  %v1417 = vmul.f32 %v1243, %v1349
  %v1418 = vmul.f32 %v1248, %v1351
  %v1419 = vmul.f32 %v1251, %v1353
  %v1420 = vmul.f32 %v1256, %v1355
  %v1421 = vmul.f32 %v1259, %v1357
  %1454 = vrot.lane.b32.xlu0 %v1390, 96
  %v1455 = vpop.permute.xlu0 %1454
  %1456 = vrot.lane.b32.xlu0 %v1391, 96
  %v1457 = vpop.permute.xlu0 %1456
  %1458 = vrot.lane.b32.xlu0 %v1392, 96
  %v1459 = vpop.permute.xlu0 %1458
  %1460 = vrot.lane.b32.xlu0 %v1393, 96
  %v1461 = vpop.permute.xlu0 %1460
  %1462 = vrot.lane.b32.xlu0 %v1394, 96
  %v1463 = vpop.permute.xlu0 %1462
  %1464 = vrot.lane.b32.xlu0 %v1395, 96
  %v1465 = vpop.permute.xlu0 %1464
  %1466 = vrot.lane.b32.xlu0 %v1396, 96
  %v1467 = vpop.permute.xlu0 %1466
  %1468 = vrot.lane.b32.xlu0 %v1397, 96
  %v1469 = vpop.permute.xlu0 %1468
  %1470 = vrot.lane.b32.xlu0 %v1398, 96
  %v1471 = vpop.permute.xlu0 %1470
  %1472 = vrot.lane.b32.xlu0 %v1399, 96
  %v1473 = vpop.permute.xlu0 %1472
  %1474 = vrot.lane.b32.xlu0 %v1400, 96
  %v1475 = vpop.permute.xlu0 %1474
  %1476 = vrot.lane.b32.xlu0 %v1401, 96
  %v1477 = vpop.permute.xlu0 %1476
  %1478 = vrot.lane.b32.xlu0 %v1402, 96
  %v1479 = vpop.permute.xlu0 %1478
  %1480 = vrot.lane.b32.xlu0 %v1403, 96
  %v1481 = vpop.permute.xlu0 %1480
  %1482 = vrot.lane.b32.xlu0 %v1404, 96
  %v1483 = vpop.permute.xlu0 %1482
  %1484 = vrot.lane.b32.xlu0 %v1405, 96
  %v1485 = vpop.permute.xlu0 %1484
  %1486 = vrot.lane.b32.xlu0 %v1406, 96
  %v1487 = vpop.permute.xlu0 %1486
  %1488 = vrot.lane.b32.xlu0 %v1407, 96
  %v1489 = vpop.permute.xlu0 %1488
  %1490 = vrot.lane.b32.xlu0 %v1408, 96
  %v1491 = vpop.permute.xlu0 %1490
  %1492 = vrot.lane.b32.xlu0 %v1409, 96
  %v1493 = vpop.permute.xlu0 %1492
  %1494 = vrot.lane.b32.xlu0 %v1410, 96
  %v1495 = vpop.permute.xlu0 %1494
  %1496 = vrot.lane.b32.xlu0 %v1411, 96
  %v1497 = vpop.permute.xlu0 %1496
  %1498 = vrot.lane.b32.xlu0 %v1412, 96
  %v1499 = vpop.permute.xlu0 %1498
  %1500 = vrot.lane.b32.xlu0 %v1413, 96
  %v1501 = vpop.permute.xlu0 %1500
  %1502 = vrot.lane.b32.xlu0 %v1414, 96
  %v1503 = vpop.permute.xlu0 %1502
  %1504 = vrot.lane.b32.xlu0 %v1415, 96
  %v1505 = vpop.permute.xlu0 %1504
  %1506 = vrot.lane.b32.xlu0 %v1416, 96
  %v1507 = vpop.permute.xlu0 %1506
  %1508 = vrot.lane.b32.xlu0 %v1417, 96
  %v1509 = vpop.permute.xlu0 %1508
  %1510 = vrot.lane.b32.xlu0 %v1418, 96
  %v1511 = vpop.permute.xlu0 %1510
  %1512 = vrot.lane.b32.xlu0 %v1419, 96
  %v1513 = vpop.permute.xlu0 %1512
  %1514 = vrot.lane.b32.xlu0 %v1420, 96
  %v1515 = vpop.permute.xlu0 %1514
  %1516 = vrot.lane.b32.xlu0 %v1421, 96
  %v1517 = vpop.permute.xlu0 %1516
  %vm1550 = vcmask 261120
  %1551 = vst.msk [vmem:[%s7] sm:$0xff] %vm1550, %v1455
  %1552 = vst.msk [vmem:[%s7 + $0x8] sm:$0xff] %vm1550, %v1457
  %1553 = vst.msk [vmem:[%s7 + $0x10] sm:$0xff] %vm1550, %v1459
  %1554 = vst.msk [vmem:[%s7 + $0x18] sm:$0xff] %vm1550, %v1461
  %1555 = vst.msk [vmem:[%s7 + $0x20] sm:$0xff] %vm1550, %v1463
  %1556 = vst.msk [vmem:[%s7 + $0x28] sm:$0xff] %vm1550, %v1465
  %1557 = vst.msk [vmem:[%s7 + $0x30] sm:$0xff] %vm1550, %v1467
  %1558 = vst.msk [vmem:[%s7 + $0x38] sm:$0xff] %vm1550, %v1469
  %1559 = vst.msk [vmem:[%s7 + $0x40] sm:$0xff] %vm1550, %v1471
  %1560 = vst.msk [vmem:[%s7 + $0x48] sm:$0xff] %vm1550, %v1473
  %1561 = vst.msk [vmem:[%s7 + $0x50] sm:$0xff] %vm1550, %v1475
  %1562 = vst.msk [vmem:[%s7 + $0x58] sm:$0xff] %vm1550, %v1477
  %1563 = vst.msk [vmem:[%s7 + $0x60] sm:$0xff] %vm1550, %v1479
  %1564 = vst.msk [vmem:[%s7 + $0x68] sm:$0xff] %vm1550, %v1481
  %1565 = vst.msk [vmem:[%s7 + $0x70] sm:$0xff] %vm1550, %v1483
  %1566 = vst.msk [vmem:[%s7 + $0x78] sm:$0xff] %vm1550, %v1485
  %1567 = vst.msk [vmem:[%s7 + $0x80] sm:$0xff] %vm1550, %v1487
  %1568 = vst.msk [vmem:[%s7 + $0x88] sm:$0xff] %vm1550, %v1489
  %1569 = vst.msk [vmem:[%s7 + $0x90] sm:$0xff] %vm1550, %v1491
  %1570 = vst.msk [vmem:[%s7 + $0x98] sm:$0xff] %vm1550, %v1493
  %1571 = vst.msk [vmem:[%s7 + $0xa0] sm:$0xff] %vm1550, %v1495
  %1572 = vst.msk [vmem:[%s7 + $0xa8] sm:$0xff] %vm1550, %v1497
  %1573 = vst.msk [vmem:[%s7 + $0xb0] sm:$0xff] %vm1550, %v1499
  %1574 = vst.msk [vmem:[%s7 + $0xb8] sm:$0xff] %vm1550, %v1501
  %1575 = vst.msk [vmem:[%s7 + $0xc0] sm:$0xff] %vm1550, %v1503
  %1576 = vst.msk [vmem:[%s7 + $0xc8] sm:$0xff] %vm1550, %v1505
  %1577 = vst.msk [vmem:[%s7 + $0xd0] sm:$0xff] %vm1550, %v1507
  %1578 = vst.msk [vmem:[%s7 + $0xd8] sm:$0xff] %vm1550, %v1509
  %1579 = vst.msk [vmem:[%s7 + $0xe0] sm:$0xff] %vm1550, %v1511
  %1580 = vst.msk [vmem:[%s7 + $0xe8] sm:$0xff] %vm1550, %v1513
  %1581 = vst.msk [vmem:[%s7 + $0xf0] sm:$0xff] %vm1550, %v1515
  %1582 = vst.msk [vmem:[%s7 + $0xf8] sm:$0xff] %vm1550, %v1517
  // Predicated region
  $region30: #{_forward_jit.1} parent=0 // pred_check
    _
  $region31: #{_forward_jit.1} parent=0 // pred_check_branch
    %1584 = sbr.rel (0) target = $region33
  $region32: #{_forward_jit.1} parent=0 // pred_region
    _
  $region33: #{_forward_jit.1} parent=0 // pred_fallthru
    _
  // Predicated region
  $region34: #{_forward_jit.1} parent=0 // pred_check
    _
  $region35: #{_forward_jit.1} parent=0 // pred_check_branch
    %1586 = sbr.rel (0) target = $region37
  $region36: #{_forward_jit.1} parent=0 // pred_region
    _
  $region37: #{_forward_jit.1} parent=0 // pred_fallthru
    _

</llo_original>
